<compile_context>
chip_gen: v7x
topology: tpu7x:2x2x1
jax: 0.10.0
libtpu: 0.0.40
codegen_flags: <defaults>
</compile_context>

<pallas_src>
import functools

import jax
import jax.numpy as jnp
from jax.experimental import pallas as pl
from jax.experimental.pallas import tpu as pltpu

_NUM_LAYERS = 3   # conv1, conv2, conv3
_LANE = 128       # pad feature / class dims to multiples of this
_SUB = 8          # pad the number of graphs (pool rows) to multiples of this


def _round_up(v, m):
    return (v + m - 1) // m * m


def _hw_config():
    """Pick the adjacency row-tile size and the VMEM budget for this chip."""
    try:
        kind = jax.devices()[0].device_kind.lower()
    except Exception:
        kind = ""
    # v5e's MXU is 128-wide (and its default VMEM budget tighter) -> TM=128;
    # v6e / v7x have 256-wide MXUs -> TM=256 fills the M dimension of adj@H.
    tm = 128 if any(t in kind for t in ("v2", "v3", "v4", "v5")) else 256
    try:
        cap = int(pltpu.get_tpu_info().vmem_capacity_bytes)
    except Exception:
        cap = (64 << 20) if "v7" in kind else (128 << 20)
    # <= ~100 MiB on 128-MiB parts (v5e/v6e), ~56 MiB on v7x's 64 MiB.
    vmem_limit = min(int(cap * 0.88), 100 << 20)
    return tm, vmem_limit


_TM, _VMEM_LIMIT = _hw_config()


# ---------------------------------------------------------------------------
# Fused Pallas kernel
# ---------------------------------------------------------------------------
def _fused_graphsage_kernel(
    adj_in,       # resident: (N_pad, N_pad) int8 HBM ref ; streaming: (TM, N_pad) int8 tile
    invdeg_ref,   # (TM, 1)        f32   1/deg for this row tile
    x_hbm,        # (N_pad, F)     bf16  HBM ref, read exactly once
    wcat_ref,     # (1, 2F, F)     bf16  [W_l ; W_r] for the current layer
    b_ref,        # (1, 1, F)      f32   current layer's bias
    pool_ref,     # (B_pad, TM)    bf16  one-hot graph membership (column tile)
    invcnt_ref,   # (B_pad, 1)     f32   1/|graph|
    wlin_ref,     # (F, C_pad)     bf16  classifier weight
    blin_ref,     # (1, C_pad)     f32   classifier bias
    out_ref,      # (B_pad, C_pad) f32   logits (written once, at the end)
    h_ref,        # (2, N_pad, F)  bf16  scratch: ping-pong activations
    xcat_ref,     # (TM, 2F)       bf16  scratch: packed [agg | h] MXU operand
    pooled_ref,   # (B_pad, F)     f32   scratch: running pooled sum
    *opt_scratch,               # resident mode: [(N_pad, N_pad) int8 adj copy]
    adj_resident,
):
    adj_vmem = opt_scratch[0] if adj_resident else None

    l = pl.program_id(0)                 # layer index (sequential)
    i = pl.program_id(1)                 # adjacency row-tile index
    n_layers = pl.num_programs(0)
    n_tiles = pl.num_programs(1)
    tm = invdeg_ref.shape[0]
    f = wcat_ref.shape[2]
    row0 = pl.multiple_of(i * tm, tm)

    # ---- one-time staging at the very first grid step ----------------------
    @pl.when(jnp.logical_and(l == 0, i == 0))
    def _():
        # x is read exactly once: DMA it straight into the "pong" half so it
        # never pins a double-buffered BlockSpec block for the whole grid.
        pltpu.sync_copy(x_hbm, h_ref.at[1])
        if adj_resident:
            # Adjacency fits VMEM: copy it once, reuse for all 3 layers
            # instead of streaming N^2 bytes from HBM once per layer.
            pltpu.sync_copy(adj_in, adj_vmem)

    # Zero the pooled accumulator at the start of the last conv layer.
    @pl.when(jnp.logical_and(l == n_layers - 1, i == 0))
    def _():
        pooled_ref[...] = jnp.zeros_like(pooled_ref)

    # ---- one SAGEConv row tile ---------------------------------------------
    # Even layers (0, 2) read h[1] / write h[0]; the odd layer does the reverse.
    src = h_ref.at[1 - l % 2]
    dst = h_ref.at[l % 2]

    if adj_resident:
        adj_tile = adj_vmem[pl.ds(row0, tm), :]        # (TM, N_pad) int8
    else:
        adj_tile = adj_in[...]                          # (TM, N_pad) int8

    h_all = src[...]                                    # (N_pad, F) bf16
    h_tile = src[pl.ds(row0, tm), :]                    # (TM, F)    bf16

    # Un-normalized neighbor sum on the MXU (int8 counts widened on the VPU,
    # exact in bf16), then the mean normalization in f32 (keeps 1/deg precision).
    agg = jnp.dot(adj_tile.astype(jnp.bfloat16), h_all,
                  preferred_element_type=jnp.float32)   # (TM, F) f32
    agg = agg * invdeg_ref[...]

    # Single K=2F matmul: [agg | h] @ [W_l ; W_r]  (better MXU fill, one push).
    xcat_ref[:, :f] = agg.astype(jnp.bfloat16)
    xcat_ref[:, f:] = h_tile
    out = jnp.dot(xcat_ref[...], wcat_ref[0],
                  preferred_element_type=jnp.float32) + b_ref[0]
    h_out = jnp.maximum(out, 0.0).astype(jnp.bfloat16)  # fused ReLU, bf16
    dst[pl.ds(row0, tm), :] = h_out

    # ---- pooling fused into the last conv layer (per row tile) -------------
    @pl.when(l == n_layers - 1)
    def _():
        pooled_ref[...] += jnp.dot(pool_ref[...], h_out,
                                   preferred_element_type=jnp.float32)

    # ---- classifier epilogue (tiny) -----------------------------------------
    @pl.when(jnp.logical_and(l == n_layers - 1, i == n_tiles - 1))
    def _():
        pooled = pooled_ref[...] * invcnt_ref[...]
        out_ref[...] = (
            jnp.dot(pooled.astype(jnp.bfloat16), wlin_ref[...],
                    preferred_element_type=jnp.float32)
            + blin_ref[...]
        )


def _fused_forward(adj, inv_deg, x_pad, wcat, b, pool, inv_cnt, wlin, blin,
                   *, tm, adj_resident):
    n_pad, f_pad = x_pad.shape
    b_pad = pool.shape[0]
    c_pad = wlin.shape[1]
    n_tiles = n_pad // tm

    if adj_resident:
        adj_spec = pl.BlockSpec(memory_space=pl.ANY)           # DMA'd once
    else:
        adj_spec = pl.BlockSpec((tm, n_pad), lambda l, i: (i, 0))  # streamed

    # NOTE: inv_cnt / wlin / blin are constant-index and tiny, so their default
    # double-buffering is a negligible VMEM cost; left as-is.
    grid_spec = pltpu.PrefetchScalarGridSpec(
        num_scalar_prefetch=0,
        grid=(_NUM_LAYERS, n_tiles),
        in_specs=[
            adj_spec,                                                   # adj (int8)
            pl.BlockSpec((tm, 1), lambda l, i: (i, 0)),                 # 1/deg
            pl.BlockSpec(memory_space=pl.ANY),                          # x (DMA once)
            pl.BlockSpec((1, 2 * f_pad, f_pad), lambda l, i: (l, 0, 0)),  # [W_l;W_r]
            pl.BlockSpec((1, 1, f_pad), lambda l, i: (l, 0, 0)),        # bias[l]
            pl.BlockSpec((b_pad, tm), lambda l, i: (0, i)),             # pool cols
            pl.BlockSpec((b_pad, 1), lambda l, i: (0, 0)),              # 1/|graph|
            pl.BlockSpec((f_pad, c_pad), lambda l, i: (0, 0)),          # linear W
            pl.BlockSpec((1, c_pad), lambda l, i: (0, 0)),              # linear b
        ],
        out_specs=pl.BlockSpec((b_pad, c_pad), lambda l, i: (0, 0)),
        scratch_shapes=(
            [pltpu.VMEM((2, n_pad, f_pad), jnp.bfloat16),   # h ping-pong
             pltpu.VMEM((tm, 2 * f_pad), jnp.bfloat16),     # packed [agg | h]
             pltpu.VMEM((b_pad, f_pad), jnp.float32)]       # pooled accumulator
            + ([pltpu.VMEM((n_pad, n_pad), jnp.int8)] if adj_resident else [])
        ),
    )

    flops = int(
        _NUM_LAYERS * (2 * n_pad * n_pad * f_pad + 2 * n_pad * 2 * f_pad * f_pad)
        + 2 * b_pad * n_pad * f_pad
        + 2 * b_pad * f_pad * c_pad
    )
    adj_passes = 1 if adj_resident else _NUM_LAYERS
    bytes_accessed = int(
        adj_passes * n_pad * n_pad                       # int8 adjacency
        + x_pad.size * 2
        + _NUM_LAYERS * (2 * f_pad * f_pad * 2 + f_pad * 4
                         + n_pad * 4 + b_pad * n_pad * 2)
        + f_pad * c_pad * 2 + c_pad * 4 + b_pad * 4
        + b_pad * c_pad * 4
    )

    kernel = functools.partial(_fused_graphsage_kernel, adj_resident=adj_resident)
    return pl.pallas_call(
        kernel,
        out_shape=jax.ShapeDtypeStruct((b_pad, c_pad), jnp.float32),
        grid_spec=grid_spec,
        compiler_params=pltpu.CompilerParams(
            # Layer axis is sequential by construction; the row axis also
            # carries h in scratch across layers and feeds the pooled
            # accumulator, so BOTH must stay "arbitrary" (a megacore row split
            # would need cross-core h / pooled exchange).
            dimension_semantics=("arbitrary", "arbitrary"),
            vmem_limit_bytes=_VMEM_LIMIT,
        ),
        cost_estimate=pl.CostEstimate(
            flops=flops, transcendentals=0, bytes_accessed=bytes_accessed),
    )(adj, inv_deg, x_pad, wcat, b, pool, inv_cnt, wlin, blin)


# ---------------------------------------------------------------------------
# Glue: dense graph operators + padded / stacked parameters (plain JAX)
# ---------------------------------------------------------------------------
def _pad2(a, rows, cols):
    out = jnp.zeros((rows, cols), a.dtype)
    return out.at[: a.shape[0], : a.shape[1]].set(a)


def _build_operators(edge_index, batch, num_nodes, n_pad, b_pad):
    src, dst = edge_index[0], edge_index[1]
    # Adjacency counts built DIRECTLY in int8 (no dense f32 intermediate).
    # NOTE: int8 counts are exact only for edge multiplicity <= 127
    # (always true for simple graphs).
    cnt = (jnp.zeros((n_pad, n_pad), jnp.int8)
           .at[dst, src].add(jnp.ones(src.shape, jnp.int8)))
    deg = jnp.zeros((n_pad, 1), jnp.float32).at[dst, 0].add(1.0)
    inv_deg = 1.0 / jnp.maximum(deg, 1.0)                               # f32
    batch_pad = jnp.full((n_pad,), -1, jnp.int32).at[:num_nodes].set(batch)
    onehot = (batch_pad[None, :]
              == jnp.arange(b_pad, dtype=jnp.int32)[:, None]).astype(jnp.bfloat16)
    gcnt = jnp.zeros((b_pad, 1), jnp.float32).at[batch, 0].add(1.0)
    inv_cnt = 1.0 / jnp.maximum(gcnt, 1.0)                              # f32
    return cnt, inv_deg, onehot, inv_cnt


@functools.partial(jax.jit, static_argnames=("num_graphs",))
def graph_sage_forward(params, x, edge_index, batch, *, num_graphs):
    # TODO(synk): dropout is defined in __init__ but never applied in the
    # reference forward; intentionally omitted here.
    num_nodes, in_dim = x.shape
    hidden_dim = params["conv2"]["w_l"].shape[0]
    out_dim = params["conv3"]["w_l"].shape[1]
    n_classes = params["linear1"]["w"].shape[1]

    tm = _TM
    n_pad = _round_up(max(num_nodes, tm), tm)
    f_pad = _round_up(max(in_dim, hidden_dim, out_dim), _LANE)
    c_pad = _round_up(n_classes, _LANE)
    b_pad = _round_up(num_graphs, _SUB)

    # VMEM working-set estimate (bytes) -> resident vs streamed adjacency.
    fixed = (2 * n_pad * f_pad * 2            # h ping-pong scratch
             + tm * 2 * f_pad * 2             # packed [agg|h] scratch
             + b_pad * f_pad * 4              # pooled accumulator
             + tm * n_pad * 2                 # widened adj tile temp (int8->bf16)
             + 2 * (tm * 4                    # double-buffered small blocks
                    + 2 * f_pad * f_pad * 2 + f_pad * 4
                    + b_pad * tm * 2 + b_pad * 4
                    + f_pad * c_pad * 2 + c_pad * 4)
             + b_pad * c_pad * 4)
    resident_bytes = fixed + n_pad * n_pad                 # int8 adj copy
    streaming_extra = 2 * tm * n_pad                       # double-buffered tiles
    adj_resident = resident_bytes <= int(0.8 * _VMEM_LIMIT)
    del streaming_extra  # streaming path always fits when resident does not

    adj, inv_deg, pool, inv_cnt = _build_operators(
        edge_index, batch, num_nodes, n_pad, b_pad)

    x_pad = _pad2(x, n_pad, f_pad).astype(jnp.bfloat16)

    def _cat_w(p):
        w = jnp.zeros((2 * f_pad, f_pad), jnp.float32)
        w = w.at[: p["w_l"].shape[0], : p["w_l"].shape[1]].set(p["w_l"])
        w = w.at[f_pad: f_pad + p["w_r"].shape[0], : p["w_r"].shape[1]].set(p["w_r"])
        return w

    wcat = jnp.stack([_cat_w(params[f"conv{k}"]) for k in (1, 2, 3)]
                     ).astype(jnp.bfloat16)                       # (3, 2F, F)
    b = jnp.stack([_pad2(params[f"conv{k}"]["b"], 1, f_pad)
                   for k in (1, 2, 3)])                           # (3, 1, F) f32
    wlin = _pad2(params["linear1"]["w"], f_pad, c_pad).astype(jnp.bfloat16)
    blin = _pad2(params["linear1"]["b"], 1, c_pad)                # (1, C) f32

    logits = _fused_forward(adj, inv_deg, x_pad, wcat, b, pool, inv_cnt,
                            wlin, blin, tm=tm, adj_resident=adj_resident)
    return logits[:num_graphs, :n_classes]


# ---------------------------------------------------------------------------
# Parameter init + references
# ---------------------------------------------------------------------------
def init_params(key, in_dim, hidden_dim, out_dim, n_classes):
    def glorot(k, shape):
        fan_in, fan_out = shape
        limit = jnp.sqrt(6.0 / (fan_in + fan_out))
        return jax.random.uniform(k, shape, jnp.float32, -limit, limit)

    ks = jax.random.split(key, 8)
    return {
        "conv1": {"w_l": glorot(ks[0], (in_dim, hidden_dim)),
                  "w_r": glorot(ks[1], (in_dim, hidden_dim)),
                  "b": jnp.zeros((1, hidden_dim), jnp.float32)},
        "conv2": {"w_l": glorot(ks[2], (hidden_dim, hidden_dim)),
                  "w_r": glorot(ks[3], (hidden_dim, hidden_dim)),
                  "b": jnp.zeros((1, hidden_dim), jnp.float32)},
        "conv3": {"w_l": glorot(ks[4], (hidden_dim, out_dim)),
                  "w_r": glorot(ks[5], (hidden_dim, out_dim)),
                  "b": jnp.zeros((1, out_dim), jnp.float32)},
        "linear1": {"w": glorot(ks[6], (out_dim, n_classes)),
                    "b": jax.random.uniform(ks[7], (1, n_classes),
                                            jnp.float32, -0.1, 0.1)},
    }


def reference_bf16(params, x, edge_index, batch, num_graphs):
    """Pure-JAX reference mirroring the kernel's bf16 cast points."""
    bf = jnp.bfloat16
    n = x.shape[0]
    src, dst = edge_index[0], edge_index[1]
    cnt = jnp.zeros((n, n), jnp.float32).at[dst, src].add(1.0)
    inv_deg = 1.0 / jnp.maximum(cnt.sum(axis=1, keepdims=True), 1.0)
    onehot = (batch[None, :]
              == jnp.arange(num_graphs, dtype=jnp.int32)[:, None]).astype(jnp.float32)
    inv_cnt = 1.0 / jnp.maximum(onehot.sum(axis=1, keepdims=True), 1.0)

    a = cnt.astype(bf)
    h = x.astype(bf)
    for name in ("conv1", "conv2", "conv3"):
        p = params[name]
        agg = jnp.dot(a, h, preferred_element_type=jnp.float32) * inv_deg
        out = (jnp.dot(agg.astype(bf), p["w_l"].astype(bf),
                       preferred_element_type=jnp.float32)
               + jnp.dot(h, p["w_r"].astype(bf),
                         preferred_element_type=jnp.float32)
               + p["b"])
        h = jnp.maximum(out, 0.0).astype(bf)
    pooled = jnp.dot(onehot.astype(bf), h,
                     preferred_element_type=jnp.float32) * inv_cnt
    return (jnp.dot(pooled.astype(bf), params["linear1"]["w"].astype(bf),
                    preferred_element_type=jnp.float32)
            + params["linear1"]["b"])


def reference_f32(params, x, edge_index, batch, num_graphs):
    n = x.shape[0]
    a = jnp.zeros((n, n), jnp.float32).at[edge_index[1], edge_index[0]].add(1.0)
    a = a / jnp.maximum(a.sum(axis=1, keepdims=True), 1.0)
    h = x
    for name in ("conv1", "conv2", "conv3"):
        p = params[name]
        h = jnp.maximum(a @ h @ p["w_l"] + h @ p["w_r"] + p["b"], 0.0)
    onehot = (batch[None, :]
              == jnp.arange(num_graphs, dtype=jnp.int32)[:, None]).astype(jnp.float32)
    pooled = (onehot @ h) / jnp.maximum(onehot.sum(axis=1, keepdims=True), 1.0)
    return pooled @ params["linear1"]["w"] + params["linear1"]["b"]


# ---------------------------------------------------------------------------
if __name__ == "__main__":
    key = jax.random.PRNGKey(0)
    k_x, k_e, k_p = jax.random.split(key, 3)

    # small synthetic graph batch
    num_nodes = 32
    num_edges = 96
    num_graphs = 4
    in_dim, hidden_dim, out_dim, n_classes = 16, 32, 32, 8

    x = jax.random.normal(k_x, (num_nodes, in_dim), jnp.float32)
    edge_index = jax.random.randint(k_e, (2, num_edges), 0, num_nodes, jnp.int32)
    batch = jnp.repeat(jnp.arange(num_graphs, dtype=jnp.int32),
                       num_nodes // num_graphs)

    params = init_params(k_p, in_dim, hidden_dim, out_dim, n_classes)

    out = graph_sage_forward(params, x, edge_index, batch, num_graphs=num_graphs)
    out = jax.block_until_ready(out)

    ref_bf = reference_bf16(params, x, edge_index, batch, num_graphs)
    ref_fp = reference_f32(params, x, edge_index, batch, num_graphs)

    assert out.shape == (num_graphs, n_classes)
    assert jnp.allclose(out, ref_bf, atol=1e-2, rtol=1e-2), \
        "mismatch vs bf16-matched reference"
    assert jnp.allclose(out, ref_fp, atol=0.25, rtol=0.05), \
        "bf16 drift vs f32 reference too large"

    print("KERNEL_OK")
</pallas_src>

<mosaic_0001>
module attributes {stable_mosaic.version = 11 : i64} {
  func.func private @main(%arg0: i32) attributes {dimension_semantics = [#tpu.dimension_semantics<core_parallel>], iteration_bounds = array<i64: 2>, tpu.core_type = #tpu.core_type<sc_scalar_subcore>, window_params = []} {
    return
  }
}

module attributes {stable_mosaic.version = 11 : i64} {
  func.func private @main(%arg0: i32) attributes {dimension_semantics = [#tpu.dimension_semantics<core_parallel>], iteration_bounds = array<i64: 2>, tpu.core_type = #tpu.core_type<sc_scalar_subcore>, window_params = []} {
    return
  }
}

module attributes {stable_mosaic.version = 11 : i64} {
  func.func @_fused_graphsage_kernel(%arg0: i32, %arg1: i32, %arg2: memref<256x256xi8, #tpu.memory_space<any>>, %arg3: memref<256x1xf32, #tpu.memory_space<vmem>>, %arg4: memref<256x128xbf16, #tpu.memory_space<any>>, %arg5: memref<1x256x128xbf16, #tpu.memory_space<vmem>>, %arg6: memref<1x1x128xf32, #tpu.memory_space<vmem>>, %arg7: memref<8x256xbf16, #tpu.memory_space<vmem>>, %arg8: memref<8x1xf32, #tpu.memory_space<vmem>>, %arg9: memref<128x128xbf16, #tpu.memory_space<vmem>>, %arg10: memref<1x128xf32, #tpu.memory_space<vmem>>, %arg11: memref<8x128xf32, #tpu.memory_space<vmem>>, %arg12: memref<2x256x128xbf16, #tpu.memory_space<vmem>>, %arg13: memref<256x256xbf16, #tpu.memory_space<vmem>>, %arg14: memref<8x128xf32, #tpu.memory_space<vmem>>, %arg15: memref<256x256xi8, #tpu.memory_space<vmem>>) attributes {dimension_semantics = [#tpu.dimension_semantics<arbitrary>, #tpu.dimension_semantics<arbitrary>], iteration_bounds = array<i64: 3, 1>, scalar_prefetch = 0 : i64, scratch_operands = 4 : i64, tpu.core_type = #tpu.core_type<tc>, window_params = [{}, {transform_indices = @transform_1, window_bounds = array<i64: 256, 1>}, {}, {transform_indices = @transform_3, window_bounds = array<i64: 1, 256, 128>}, {transform_indices = @transform_4, window_bounds = array<i64: 1, 1, 128>}, {transform_indices = @transform_5, window_bounds = array<i64: 8, 256>}, {pipeline_mode = #tpu.pipeline_mode<synchronous>, transform_indices = @transform_6, window_bounds = array<i64: 8, 1>}, {pipeline_mode = #tpu.pipeline_mode<synchronous>, transform_indices = @transform_7, window_bounds = array<i64: 128, 128>}, {pipeline_mode = #tpu.pipeline_mode<synchronous>, transform_indices = @transform_8, window_bounds = array<i64: 1, 128>}, {pipeline_mode = #tpu.pipeline_mode<synchronous>, transform_indices = @transform_9, window_bounds = array<i64: 8, 128>}]} {
    %c256_i32 = arith.constant 256 : i32
    %0 = arith.muli %arg1, %c256_i32 : i32
    %1 = tpu.assume_multiple %0, 256 : i32
    %c0_i32 = arith.constant 0 : i32
    %2 = arith.cmpi eq, %arg0, %c0_i32 : i32
    %c0_i32_0 = arith.constant 0 : i32
    %3 = arith.cmpi eq, %arg1, %c0_i32_0 : i32
    %4 = arith.andi %2, %3 : i1
    %5 = arith.extui %4 : i1 to i32
    %c0_i32_1 = arith.constant 0 : i32
    %6 = arith.cmpi ne, %5, %c0_i32_1 : i32
    scf.if %6 {
      %c1_i32_44 = arith.constant 1 : i32
      "tpu.region"() ({
        %73 = tpu.sem_alloc : memref<!tpu.dma_semaphore, #tpu.memory_space<semaphore_mem>>
        %c0_i32_45 = arith.constant 0 : i32
        %c0_i32_46 = arith.constant 0 : i32
        %74 = tpu.memref_slice %arg12[%c1_i32_44, %c0_i32_45, %c0_i32_46] : memref<2x256x128xbf16, #tpu.memory_space<vmem>> -> memref<1x256x128xbf16, #tpu.memory_space<vmem>>
        %75 = tpu.memref_squeeze %74 : memref<1x256x128xbf16, #tpu.memory_space<vmem>> -> memref<256x128xbf16, #tpu.memory_space<vmem>>
        tpu.enqueue_dma source(%arg4 : memref<256x128xbf16, #tpu.memory_space<any>>) target(%75 : memref<256x128xbf16, #tpu.memory_space<vmem>>) target_semaphore(%73 : memref<!tpu.dma_semaphore, #tpu.memory_space<semaphore_mem>>)
        %c0_i32_47 = arith.constant 0 : i32
        %c0_i32_48 = arith.constant 0 : i32
        %76 = tpu.memref_slice %arg12[%c1_i32_44, %c0_i32_47, %c0_i32_48] : memref<2x256x128xbf16, #tpu.memory_space<vmem>> -> memref<1x256x128xbf16, #tpu.memory_space<vmem>>
        %77 = tpu.memref_squeeze %76 : memref<1x256x128xbf16, #tpu.memory_space<vmem>> -> memref<256x128xbf16, #tpu.memory_space<vmem>>
        tpu.wait_dma2 semaphore(%73 : memref<!tpu.dma_semaphore, #tpu.memory_space<semaphore_mem>>) src(%arg4 : memref<256x128xbf16, #tpu.memory_space<any>>) dst(%77 : memref<256x128xbf16, #tpu.memory_space<vmem>>)
        tpu.yield
      }) : () -> ()
      "tpu.region"() ({
        %73 = tpu.sem_alloc : memref<!tpu.dma_semaphore, #tpu.memory_space<semaphore_mem>>
        tpu.enqueue_dma source(%arg2 : memref<256x256xi8, #tpu.memory_space<any>>) target(%arg15 : memref<256x256xi8, #tpu.memory_space<vmem>>) target_semaphore(%73 : memref<!tpu.dma_semaphore, #tpu.memory_space<semaphore_mem>>)
        tpu.wait_dma2 semaphore(%73 : memref<!tpu.dma_semaphore, #tpu.memory_space<semaphore_mem>>) src(%arg2 : memref<256x256xi8, #tpu.memory_space<any>>) dst(%arg15 : memref<256x256xi8, #tpu.memory_space<vmem>>)
        tpu.yield
      }) : () -> ()
    } else {
    }
    %c2_i32 = arith.constant 2 : i32
    %7 = arith.cmpi eq, %arg0, %c2_i32 : i32
    %c0_i32_2 = arith.constant 0 : i32
    %8 = arith.cmpi eq, %arg1, %c0_i32_2 : i32
    %9 = arith.andi %7, %8 : i1
    %10 = arith.extui %9 : i1 to i32
    %c0_i32_3 = arith.constant 0 : i32
    %11 = arith.cmpi ne, %10, %c0_i32_3 : i32
    scf.if %11 {
      %cst_44 = arith.constant 0.000000e+00 : f32
      %73 = vector.broadcast %cst_44 : f32 to vector<8x128xf32>
      %c0_45 = arith.constant 0 : index
      %c0_46 = arith.constant 0 : index
      %74 = vector.load %arg14[%c0_45, %c0_46] : memref<8x128xf32, #tpu.memory_space<vmem>>, vector<8x128xf32>
      tpu.vector_store %arg14[%c0_45, %c0_46], %73 {strides = array<i32>} : memref<8x128xf32, #tpu.memory_space<vmem>>, vector<8x128xf32>,
    } else {
    }
    %c2_i32_4 = arith.constant 2 : i32
    %c0_i32_5 = arith.constant 0 : i32
    %12 = arith.cmpi eq, %c2_i32_4, %c0_i32_5 : i32
    %c1_i32 = arith.constant 1 : i32
    %13 = arith.select %12, %c1_i32, %c2_i32_4 : i32
    %14 = arith.remsi %arg0, %13 : i32
    %c0_i32_6 = arith.constant 0 : i32
    %15 = arith.cmpi ne, %14, %c0_i32_6 : i32
    %c0_i32_7 = arith.constant 0 : i32
    %16 = arith.cmpi slt, %14, %c0_i32_7 : i32
    %c0_i32_8 = arith.constant 0 : i32
    %17 = arith.cmpi slt, %13, %c0_i32_8 : i32
    %18 = arith.xori %16, %17 : i1
    %19 = arith.andi %18, %15 : i1
    %20 = arith.addi %14, %13 : i32
    %21 = arith.select %19, %20, %14 : i32
    %c1_i32_9 = arith.constant 1 : i32
    %22 = arith.subi %c1_i32_9, %21 : i32
    %c2_i32_10 = arith.constant 2 : i32
    %c0_i32_11 = arith.constant 0 : i32
    %23 = arith.cmpi eq, %c2_i32_10, %c0_i32_11 : i32
    %c1_i32_12 = arith.constant 1 : i32
    %24 = arith.select %23, %c1_i32_12, %c2_i32_10 : i32
    %25 = arith.remsi %arg0, %24 : i32
    %c0_i32_13 = arith.constant 0 : i32
    %26 = arith.cmpi ne, %25, %c0_i32_13 : i32
    %c0_i32_14 = arith.constant 0 : i32
    %27 = arith.cmpi slt, %25, %c0_i32_14 : i32
    %c0_i32_15 = arith.constant 0 : i32
    %28 = arith.cmpi slt, %24, %c0_i32_15 : i32
    %29 = arith.xori %27, %28 : i1
    %30 = arith.andi %29, %26 : i1
    %31 = arith.addi %25, %24 : i32
    %32 = arith.select %30, %31, %25 : i32
    %33 = arith.index_cast %1 : i32 to index
    %c0 = arith.constant 0 : index
    %34 = vector.load %arg15[%33, %c0] : memref<256x256xi8, #tpu.memory_space<vmem>>, vector<256x256xi8>
    %35 = arith.index_cast %22 : i32 to index
    %c0_16 = arith.constant 0 : index
    %c0_17 = arith.constant 0 : index
    %36 = vector.load %arg12[%35, %c0_16, %c0_17] : memref<2x256x128xbf16, #tpu.memory_space<vmem>>, vector<1x256x128xbf16>
    %37 = vector.shape_cast %36 : vector<1x256x128xbf16> to vector<256x128xbf16>
    %c0_i32_18 = arith.constant 0 : i32
    %c0_i32_19 = arith.constant 0 : i32
    %38 = tpu.memref_slice %arg12[%22, %c0_i32_18, %c0_i32_19] : memref<2x256x128xbf16, #tpu.memory_space<vmem>> -> memref<1x256x128xbf16, #tpu.memory_space<vmem>>
    %39 = tpu.memref_squeeze %38 : memref<1x256x128xbf16, #tpu.memory_space<vmem>> -> memref<256x128xbf16, #tpu.memory_space<vmem>>
    %40 = arith.index_cast %1 : i32 to index
    %c0_20 = arith.constant 0 : index
    %41 = vector.load %39[%40, %c0_20] : memref<256x128xbf16, #tpu.memory_space<vmem>>, vector<256x128xbf16>
    %42 = arith.sitofp %34 : vector<256x256xi8> to vector<256x256xbf16>
    %cst = arith.constant dense<0.000000e+00> : vector<256x128xf32>
    %43 = tpu.matmul %42, %37, %cst {dimension_numbers = #tpu.dot_dimension_numbers<[1], [0], [0], [1], [0, 0, 1, 1], [], []>} : vector<256x256xbf16>, vector<256x128xbf16>, vector<256x128xf32> -> vector<256x128xf32>
    %c0_21 = arith.constant 0 : index
    %c0_22 = arith.constant 0 : index
    %44 = vector.load %arg3[%c0_21, %c0_22] : memref<256x1xf32, #tpu.memory_space<vmem>>, vector<256x1xf32>
    %45 = vector.broadcast %44 : vector<256x1xf32> to vector<256x128xf32>
    %46 = arith.mulf %43, %45 : vector<256x128xf32>
    %47 = arith.truncf %46 : vector<256x128xf32> to vector<256x128xbf16>
    %c0_23 = arith.constant 0 : index
    %c0_24 = arith.constant 0 : index
    %48 = vector.load %arg13[%c0_23, %c0_24] : memref<256x256xbf16, #tpu.memory_space<vmem>>, vector<256x128xbf16>
    tpu.vector_store %arg13[%c0_23, %c0_24], %47 {strides = array<i32>} : memref<256x256xbf16, #tpu.memory_space<vmem>>, vector<256x128xbf16>,
    %c0_25 = arith.constant 0 : index
    %c128 = arith.constant 128 : index
    %49 = vector.load %arg13[%c0_25, %c128] : memref<256x256xbf16, #tpu.memory_space<vmem>>, vector<256x128xbf16>
    tpu.vector_store %arg13[%c0_25, %c128], %41 {strides = array<i32>} : memref<256x256xbf16, #tpu.memory_space<vmem>>, vector<256x128xbf16>,
    %c0_26 = arith.constant 0 : index
    %c0_27 = arith.constant 0 : index
    %50 = vector.load %arg13[%c0_26, %c0_27] : memref<256x256xbf16, #tpu.memory_space<vmem>>, vector<256x256xbf16>
    %c0_28 = arith.constant 0 : index
    %c0_29 = arith.constant 0 : index
    %c0_30 = arith.constant 0 : index
    %51 = vector.load %arg5[%c0_28, %c0_29, %c0_30] : memref<1x256x128xbf16, #tpu.memory_space<vmem>>, vector<1x256x128xbf16>
    %52 = vector.shape_cast %51 : vector<1x256x128xbf16> to vector<256x128xbf16>
    %cst_31 = arith.constant dense<0.000000e+00> : vector<256x128xf32>
    %53 = tpu.matmul %50, %52, %cst_31 {dimension_numbers = #tpu.dot_dimension_numbers<[1], [0], [0], [1], [0, 0, 1, 1], [], []>} : vector<256x256xbf16>, vector<256x128xbf16>, vector<256x128xf32> -> vector<256x128xf32>
    %c0_32 = arith.constant 0 : index
    %c0_33 = arith.constant 0 : index
    %c0_34 = arith.constant 0 : index
    %54 = vector.load %arg6[%c0_32, %c0_33, %c0_34] : memref<1x1x128xf32, #tpu.memory_space<vmem>>, vector<1x1x128xf32>
    %55 = vector.shape_cast %54 : vector<1x1x128xf32> to vector<1x128xf32>
    %56 = vector.broadcast %55 : vector<1x128xf32> to vector<256x128xf32>
    %57 = arith.addf %53, %56 : vector<256x128xf32>
    %cst_35 = arith.constant 0.000000e+00 : f32
    %58 = vector.broadcast %cst_35 : f32 to vector<256x128xf32>
    %59 = arith.maximumf %57, %58 : vector<256x128xf32>
    %60 = arith.truncf %59 : vector<256x128xf32> to vector<256x128xbf16>
    %c0_i32_36 = arith.constant 0 : i32
    %c0_i32_37 = arith.constant 0 : i32
    %61 = tpu.memref_slice %arg12[%32, %c0_i32_36, %c0_i32_37] : memref<2x256x128xbf16, #tpu.memory_space<vmem>> -> memref<1x256x128xbf16, #tpu.memory_space<vmem>>
    %62 = tpu.memref_squeeze %61 : memref<1x256x128xbf16, #tpu.memory_space<vmem>> -> memref<256x128xbf16, #tpu.memory_space<vmem>>
    %63 = arith.index_cast %1 : i32 to index
    %c0_38 = arith.constant 0 : index
    %64 = vector.load %62[%63, %c0_38] : memref<256x128xbf16, #tpu.memory_space<vmem>>, vector<256x128xbf16>
    tpu.vector_store %62[%63, %c0_38], %60 {strides = array<i32>} : memref<256x128xbf16, #tpu.memory_space<vmem>>, vector<256x128xbf16>,
    %c2_i32_39 = arith.constant 2 : i32
    %65 = arith.cmpi eq, %arg0, %c2_i32_39 : i32
    %66 = arith.extui %65 : i1 to i32
    %c0_i32_40 = arith.constant 0 : i32
    %67 = arith.cmpi ne, %66, %c0_i32_40 : i32
    scf.if %67 {
      %c0_44 = arith.constant 0 : index
      %c0_45 = arith.constant 0 : index
      %73 = vector.load %arg14[%c0_44, %c0_45] : memref<8x128xf32, #tpu.memory_space<vmem>>, vector<8x128xf32>
      %c0_46 = arith.constant 0 : index
      %c0_47 = arith.constant 0 : index
      %74 = vector.load %arg7[%c0_46, %c0_47] : memref<8x256xbf16, #tpu.memory_space<vmem>>, vector<8x256xbf16>
      %cst_48 = arith.constant dense<0.000000e+00> : vector<8x128xf32>
      %75 = tpu.matmul %74, %60, %cst_48 {dimension_numbers = #tpu.dot_dimension_numbers<[1], [0], [0], [1], [0, 0, 1, 1], [], []>} : vector<8x256xbf16>, vector<256x128xbf16>, vector<8x128xf32> -> vector<8x128xf32>
      %76 = arith.addf %73, %75 : vector<8x128xf32>
      %c0_49 = arith.constant 0 : index
      %c0_50 = arith.constant 0 : index
      %77 = vector.load %arg14[%c0_49, %c0_50] : memref<8x128xf32, #tpu.memory_space<vmem>>, vector<8x128xf32>
      tpu.vector_store %arg14[%c0_49, %c0_50], %76 {strides = array<i32>} : memref<8x128xf32, #tpu.memory_space<vmem>>, vector<8x128xf32>,
    } else {
    }
    %c2_i32_41 = arith.constant 2 : i32
    %68 = arith.cmpi eq, %arg0, %c2_i32_41 : i32
    %c0_i32_42 = arith.constant 0 : i32
    %69 = arith.cmpi eq, %arg1, %c0_i32_42 : i32
    %70 = arith.andi %68, %69 : i1
    %71 = arith.extui %70 : i1 to i32
    %c0_i32_43 = arith.constant 0 : i32
    %72 = arith.cmpi ne, %71, %c0_i32_43 : i32
    scf.if %72 {
      %c0_44 = arith.constant 0 : index
      %c0_45 = arith.constant 0 : index
      %73 = vector.load %arg14[%c0_44, %c0_45] : memref<8x128xf32, #tpu.memory_space<vmem>>, vector<8x128xf32>
      %c0_46 = arith.constant 0 : index
      %c0_47 = arith.constant 0 : index
      %74 = vector.load %arg8[%c0_46, %c0_47] : memref<8x1xf32, #tpu.memory_space<vmem>>, vector<8x1xf32>
      %75 = vector.broadcast %74 : vector<8x1xf32> to vector<8x128xf32>
      %76 = arith.mulf %73, %75 : vector<8x128xf32>
      %77 = arith.truncf %76 : vector<8x128xf32> to vector<8x128xbf16>
      %c0_48 = arith.constant 0 : index
      %c0_49 = arith.constant 0 : index
      %78 = vector.load %arg9[%c0_48, %c0_49] : memref<128x128xbf16, #tpu.memory_space<vmem>>, vector<128x128xbf16>
      %cst_50 = arith.constant dense<0.000000e+00> : vector<8x128xf32>
      %79 = tpu.matmul %77, %78, %cst_50 {dimension_numbers = #tpu.dot_dimension_numbers<[1], [0], [0], [1], [0, 0, 1, 1], [], []>} : vector<8x128xbf16>, vector<128x128xbf16>, vector<8x128xf32> -> vector<8x128xf32>
      %c0_51 = arith.constant 0 : index
      %c0_52 = arith.constant 0 : index
      %80 = vector.load %arg10[%c0_51, %c0_52] : memref<1x128xf32, #tpu.memory_space<vmem>>, vector<1x128xf32>
      %81 = vector.broadcast %80 : vector<1x128xf32> to vector<8x128xf32>
      %82 = arith.addf %79, %81 : vector<8x128xf32>
      %c0_53 = arith.constant 0 : index
      %c0_54 = arith.constant 0 : index
      %83 = vector.load %arg11[%c0_53, %c0_54] : memref<8x128xf32, #tpu.memory_space<vmem>>, vector<8x128xf32>
      tpu.vector_store %arg11[%c0_53, %c0_54], %82 {strides = array<i32>} : memref<8x128xf32, #tpu.memory_space<vmem>>, vector<8x128xf32>,
    } else {
    }
    return
  }
  func.func @transform_1(%arg0: i32, %arg1: i32) -> (i32, i32) {
    %c0_i32 = arith.constant 0 : i32
    %c0_i32_0 = arith.constant 0 : i32
    return %arg1, %c0_i32 : i32, i32
  }
  func.func @transform_3(%arg0: i32, %arg1: i32) -> (i32, i32, i32) {
    %c0_i32 = arith.constant 0 : i32
    %c0_i32_0 = arith.constant 0 : i32
    %c0_i32_1 = arith.constant 0 : i32
    return %arg0, %c0_i32, %c0_i32_0 : i32, i32, i32
  }
  func.func @transform_4(%arg0: i32, %arg1: i32) -> (i32, i32, i32) {
    %c0_i32 = arith.constant 0 : i32
    %c0_i32_0 = arith.constant 0 : i32
    %c0_i32_1 = arith.constant 0 : i32
    return %arg0, %c0_i32, %c0_i32_0 : i32, i32, i32
  }
  func.func @transform_5(%arg0: i32, %arg1: i32) -> (i32, i32) {
    %c0_i32 = arith.constant 0 : i32
    %c0_i32_0 = arith.constant 0 : i32
    return %c0_i32, %arg1 : i32, i32
  }
  func.func @transform_6(%arg0: i32, %arg1: i32) -> (i32, i32) {
    %c0_i32 = arith.constant 0 : i32
    %c0_i32_0 = arith.constant 0 : i32
    %c0_i32_1 = arith.constant 0 : i32
    return %c0_i32, %c0_i32_0 : i32, i32
  }
  func.func @transform_7(%arg0: i32, %arg1: i32) -> (i32, i32) {
    %c0_i32 = arith.constant 0 : i32
    %c0_i32_0 = arith.constant 0 : i32
    %c0_i32_1 = arith.constant 0 : i32
    return %c0_i32, %c0_i32_0 : i32, i32
  }
  func.func @transform_8(%arg0: i32, %arg1: i32) -> (i32, i32) {
    %c0_i32 = arith.constant 0 : i32
    %c0_i32_0 = arith.constant 0 : i32
    %c0_i32_1 = arith.constant 0 : i32
    return %c0_i32, %c0_i32_0 : i32, i32
  }
  func.func @transform_9(%arg0: i32, %arg1: i32) -> (i32, i32) {
    %c0_i32 = arith.constant 0 : i32
    %c0_i32_0 = arith.constant 0 : i32
    %c0_i32_1 = arith.constant 0 : i32
    return %c0_i32, %c0_i32_0 : i32, i32
  }
}

</mosaic_0001>

<llo_original>
// kernel: graph_sage_forward.1
$region0: #{graph_sage_forward.1}
  #allocation0 [shape = 'u32[]', space=smem, size = 0x4, offset = 0x4, fixed_abs, tag = 'smem constant byte address 0x4 - core index']
  #allocation1 [shape = 'u32[144,128]{1,0:T(1,128)}', space=vmem, size = 0x12000, scoped, tag = 'internal scratch']
  #allocation2 [shape = 'bf16[2,256,128]{2,1,0:T(16,128)(2,1)}', space=vmem, size = 0x20000, scoped, tag = 'scratch operand']
  #allocation3 [shape = 'bf16[256,256]{1,0:T(16,128)(2,1)}', space=vmem, size = 0x20000, scoped, tag = 'scratch operand']
  #allocation4 [shape = 'f32[8,128]{1,0:T(8,128)}', space=vmem, size = 0x1000, scoped, tag = 'scratch operand']
  #allocation5 [shape = 's8[256,256]{1,0:T(32,128)(4,1)}', space=vmem, size = 0x10000, scoped, tag = 'scratch operand']
  #allocation20 [shape = 's32[]', space=sflag, size = 0x4, offset = 0, fixed_abs, tag = 'sflag constant byte address 0x0 - dummy sync flag']
  #allocation21 [shape = 's32[]', space=sflag, size = 0x4, offset = 0, fixed_abs, tag = 'sflag constant byte address 0x0 - dummy sync flag']
  #allocation22 [shape = 'u32[]', space=smem, size = 0x4, offset = 0x44, fixed_abs, tag = 'smem constant byte address 0x44 - assertion arg 0']
  #allocation23 [shape = 'u32[]', space=smem, size = 0x4, offset = 0x48, fixed_abs, tag = 'smem constant byte address 0x48 - assertion arg 1']
  #allocation25 [shape = 's32[]', space=sflag, size = 0x4, offset = 0, fixed_abs, tag = 'sflag constant byte address 0x0 - dummy sync flag']
  %s0 = inlined_call_operand.hbm [shape: s8[256,256], index: 0, kind: input, shape index: {}]
  %s1 = inlined_call_operand.hbm [shape: f32[256,1], index: 1, kind: input, shape index: {}]
  %s2 = inlined_call_operand.hbm [shape: bf16[256,128], index: 2, kind: input, shape index: {}]
  %s3 = inlined_call_operand.hbm [shape: bf16[3,256,128], index: 3, kind: input, shape index: {}]
  %s4 = inlined_call_operand.hbm [shape: f32[3,1,128], index: 4, kind: input, shape index: {}]
  %s5 = inlined_call_operand.hbm [shape: bf16[8,256], index: 5, kind: input, shape index: {}]
  %s6 = inlined_call_operand.hbm [shape: f32[8,1], index: 6, kind: input, shape index: {}]
  %s7 = inlined_call_operand.hbm [shape: bf16[128,128], index: 7, kind: input, shape index: {}]
  %s8 = inlined_call_operand.hbm [shape: f32[1,128], index: 8, kind: input, shape index: {}]
  %s9 = inlined_call_operand.hbm [shape: f32[8,128], index: 9, kind: output, shape index: {}]
  %s10 = sld [smem:[#allocation0]]
  $region111: #{graph_sage_forward.1} parent=0
    _
  %s12 = ssub.s32 1, %s10
  %s13 = scalar_select 0, %s12, %s10
  $region1: #{graph_sage_forward.1} parent=0
    #allocation6 [shape = 'u8[131072]{0}', space=vmem, size = 0x20000, scoped, tag = 'input window, operand 1, single buffered']
    #allocation7 [shape = 's32[2]{0}', space=sflag, size = 0x8, scoped, tag = 'scoped memory for graph_sage_forward.1']
    #allocation8 [shape = 's32[2]{0}', space=sflag, size = 0x8, scoped, tag = 'scoped memory for graph_sage_forward.1']
    #allocation9 [shape = 'u8[131072]{0}', space=vmem, size = 0x20000, scoped, tag = 'input window, operand 3']
    #allocation10 [shape = 's32[2]{0}', space=sflag, size = 0x8, scoped, tag = 'scoped memory for graph_sage_forward.1']
    #allocation11 [shape = 'u8[1024]{0}', space=vmem, size = 0x400, scoped, tag = 'input window, operand 4']
    #allocation12 [shape = 'u8[4096]{0}', space=vmem, size = 0x1000, scoped, tag = 'input window, operand 5, single buffered']
    #allocation13 [shape = 's32[1]{0}', space=sflag, size = 0x4, scoped, tag = 'scoped memory for graph_sage_forward.1']
    #allocation14 [shape = 'u8[4096]{0}', space=vmem, size = 0x1000, scoped, tag = 'input window, operand 6, single buffered']
    #allocation15 [shape = 'u8[32768]{0}', space=vmem, size = 0x8000, scoped, tag = 'input window, operand 7, single buffered']
    #allocation16 [shape = 's32[1]{0}', space=sflag, size = 0x4, scoped, tag = 'scoped memory for graph_sage_forward.1']
    #allocation17 [shape = 'u8[512]{0}', space=vmem, size = 0x400, scoped, tag = 'input window, operand 8, single buffered']
    #allocation18 [shape = 'u8[4096]{0}', space=vmem, size = 0x1000, scoped, tag = 'output window, operand 0, single buffered']
    %14 = vsyncpa [#allocation7], 0
    %15 = vsyncpa [#allocation10], 0
    %s16 = scalar_lea.sflag [#allocation10], 1
    %17 = vsyncpa %s16, 0
    %18 = vsyncpa [#allocation13], 0
    %19 = vsyncpa [#allocation16], 0
    %20 = vsyncpa [#allocation8], 0
    loop: start=0, step=1, limit=5
    $region2: #{graph_sage_forward.1} parent=1 // loop_pre_header
      _
    $region3: #{graph_sage_forward.1} parent=1 // loop_header
      %s22 = sphi 0, %s26
      %p23 = scmp.ge.s32.totalorder %s22, 5
      %s29 = sphi 0, %s41
      %s30 = sphi 0, %s37
      %s31 = sphi 0, %s29
      %s32 = sphi 0, %s30
      %s33 = sphi 0, %s31
      %s34 = sphi 0, %s32
      %s44 = sphi 0, %s46
      %s47 = sphi 0, %s44
      %s48 = sphi 0, %s47
      %s64 = sphi 0, %s48
      %s70 = sphi 0, %s72
      %s73 = sphi 0, %s70
      %s74 = sphi 0, %s73
      %s90 = sphi 0, %s74
      %s96 = sphi 0, %s98
      %s99 = sphi 0, %s96
      %s100 = sphi 0, %s99
      %s116 = sphi 0, %s100
      %s122 = sphi 0, %s124
      %s125 = sphi 0, %s122
      %s126 = sphi 0, %s125
      %s142 = sphi 0, %s126
      %s146 = sphi 0, %s146
      %s148 = sphi 0, %s146
      %s149 = sphi 0, %s148
      %s163 = sphi 0, %s149
      %s167 = sphi 0, %s167
      %s169 = sphi 0, %s167
      %s170 = sphi 0, %s169
      %s184 = sphi 0, %s170
      %s188 = sphi 0, %s188
      %s190 = sphi 0, %s188
      %s191 = sphi 0, %s190
      %s205 = sphi 0, %s191
      %s209 = sphi 0, %s209
      %s211 = sphi 0, %s209
      %s212 = sphi 0, %s211
      %s226 = sphi 0, %s212
    $region4: #{graph_sage_forward.1} parent=1 // loop_header_branch
      %25 = sbr.rel (%p23) target = $region8
    $region5: #{graph_sage_forward.1} parent=1 // loop_body
      %s27 = ssub.s32 %s22, 1
      %s28 = ssub.s32 %s22, 2
      %s35 = sadd.s32 1, %s30
      %p36 = scmp.ge.s32.totalorder %s35, 1
      %s37 = scalar_select %p36, 0, %s35
      %s38 = sadd.s32 1, %s29
      %s39 = scalar_select %p36, %s38, %s29
      %p40 = scmp.ge.s32.totalorder %s39, 3
      %s41 = scalar_select %p40, 0, %s39
      %s42 = ssub.s32 %s30, %s37
      %p43 = scmp.eq.s32.totalorder %s42, 0
      %s45 = sadd.s32 %s44, 1
      %s46 = scalar_select %p43, %s44, %s45
      %p49 = pneg %p43
      %p50 = scmp.eq.s32.totalorder %s22, 2
      %p51 = por %p49, %p50
      %p52 = scmp.ne.s32.totalorder %s44, %s47
      %p53 = scmp.eq.s32.totalorder %s22, 0
      %p54 = por %p52, %p53
      %p55 = scmp.ne.s32.totalorder %s44, %s47
      %p56 = scmp.eq.s32.totalorder %s27, 2
      %p57 = por %p55, %p56
      %p58 = scmp.ne.s32.totalorder %s47, %s48
      %p59 = scmp.eq.s32.totalorder %s27, 0
      %p60 = por %p58, %p59
      %p61 = scmp.ne.s32.totalorder %s47, %s48
      %p62 = scmp.eq.s32.totalorder %s28, 2
      %p63 = por %p61, %p62
      %p65 = scmp.ne.s32.totalorder %s48, %s64
      %p66 = scmp.eq.s32.totalorder %s28, 0
      %p67 = por %p65, %p66
      %s68 = ssub.s32 %s29, %s41
      %p69 = scmp.eq.s32.totalorder %s68, 0
      %s71 = sadd.s32 %s70, 1
      %s72 = scalar_select %p69, %s70, %s71
      %p75 = pneg %p69
      %p76 = scmp.eq.s32.totalorder %s22, 2
      %p77 = por %p75, %p76
      %p78 = scmp.ne.s32.totalorder %s70, %s73
      %p79 = scmp.eq.s32.totalorder %s22, 0
      %p80 = por %p78, %p79
      %p81 = scmp.ne.s32.totalorder %s70, %s73
      %p82 = scmp.eq.s32.totalorder %s27, 2
      %p83 = por %p81, %p82
      %p84 = scmp.ne.s32.totalorder %s73, %s74
      %p85 = scmp.eq.s32.totalorder %s27, 0
      %p86 = por %p84, %p85
      %p87 = scmp.ne.s32.totalorder %s73, %s74
      %p88 = scmp.eq.s32.totalorder %s28, 2
      %p89 = por %p87, %p88
      %p91 = scmp.ne.s32.totalorder %s74, %s90
      %p92 = scmp.eq.s32.totalorder %s28, 0
      %p93 = por %p91, %p92
      %s94 = ssub.s32 %s29, %s41
      %p95 = scmp.eq.s32.totalorder %s94, 0
      %s97 = sadd.s32 %s96, 1
      %s98 = scalar_select %p95, %s96, %s97
      %p101 = pneg %p95
      %p102 = scmp.eq.s32.totalorder %s22, 2
      %p103 = por %p101, %p102
      %p104 = scmp.ne.s32.totalorder %s96, %s99
      %p105 = scmp.eq.s32.totalorder %s22, 0
      %p106 = por %p104, %p105
      %p107 = scmp.ne.s32.totalorder %s96, %s99
      %p108 = scmp.eq.s32.totalorder %s27, 2
      %p109 = por %p107, %p108
      %p110 = scmp.ne.s32.totalorder %s99, %s100
      %p111 = scmp.eq.s32.totalorder %s27, 0
      %p112 = por %p110, %p111
      %p113 = scmp.ne.s32.totalorder %s99, %s100
      %p114 = scmp.eq.s32.totalorder %s28, 2
      %p115 = por %p113, %p114
      %p117 = scmp.ne.s32.totalorder %s100, %s116
      %p118 = scmp.eq.s32.totalorder %s28, 0
      %p119 = por %p117, %p118
      %s120 = ssub.s32 %s30, %s37
      %p121 = scmp.eq.s32.totalorder %s120, 0
      %s123 = sadd.s32 %s122, 1
      %s124 = scalar_select %p121, %s122, %s123
      %p127 = pneg %p121
      %p128 = scmp.eq.s32.totalorder %s22, 2
      %p129 = por %p127, %p128
      %p130 = scmp.ne.s32.totalorder %s122, %s125
      %p131 = scmp.eq.s32.totalorder %s22, 0
      %p132 = por %p130, %p131
      %p133 = scmp.ne.s32.totalorder %s122, %s125
      %p134 = scmp.eq.s32.totalorder %s27, 2
      %p135 = por %p133, %p134
      %p136 = scmp.ne.s32.totalorder %s125, %s126
      %p137 = scmp.eq.s32.totalorder %s27, 0
      %p138 = por %p136, %p137
      %p139 = scmp.ne.s32.totalorder %s125, %s126
      %p140 = scmp.eq.s32.totalorder %s28, 2
      %p141 = por %p139, %p140
      %p143 = scmp.ne.s32.totalorder %s126, %s142
      %p144 = scmp.eq.s32.totalorder %s28, 0
      %p145 = por %p143, %p144
      %s147 = sadd.s32 %s146, 1
      %p150 = scmp.eq.s32.totalorder %s22, 2
      %p151 = scmp.ne.s32.totalorder %s146, %s148
      %p152 = scmp.eq.s32.totalorder %s22, 0
      %p153 = por %p151, %p152
      %p154 = scmp.ne.s32.totalorder %s146, %s148
      %p155 = scmp.eq.s32.totalorder %s27, 2
      %p156 = por %p154, %p155
      %p157 = scmp.ne.s32.totalorder %s148, %s149
      %p158 = scmp.eq.s32.totalorder %s27, 0
      %p159 = por %p157, %p158
      %p160 = scmp.ne.s32.totalorder %s148, %s149
      %p161 = scmp.eq.s32.totalorder %s28, 2
      %p162 = por %p160, %p161
      %p164 = scmp.ne.s32.totalorder %s149, %s163
      %p165 = scmp.eq.s32.totalorder %s28, 0
      %p166 = por %p164, %p165
      %s168 = sadd.s32 %s167, 1
      %p171 = scmp.eq.s32.totalorder %s22, 2
      %p172 = scmp.ne.s32.totalorder %s167, %s169
      %p173 = scmp.eq.s32.totalorder %s22, 0
      %p174 = por %p172, %p173
      %p175 = scmp.ne.s32.totalorder %s167, %s169
      %p176 = scmp.eq.s32.totalorder %s27, 2
      %p177 = por %p175, %p176
      %p178 = scmp.ne.s32.totalorder %s169, %s170
      %p179 = scmp.eq.s32.totalorder %s27, 0
      %p180 = por %p178, %p179
      %p181 = scmp.ne.s32.totalorder %s169, %s170
      %p182 = scmp.eq.s32.totalorder %s28, 2
      %p183 = por %p181, %p182
      %p185 = scmp.ne.s32.totalorder %s170, %s184
      %p186 = scmp.eq.s32.totalorder %s28, 0
      %p187 = por %p185, %p186
      %s189 = sadd.s32 %s188, 1
      %p192 = scmp.eq.s32.totalorder %s22, 2
      %p193 = scmp.ne.s32.totalorder %s188, %s190
      %p194 = scmp.eq.s32.totalorder %s22, 0
      %p195 = por %p193, %p194
      %p196 = scmp.ne.s32.totalorder %s188, %s190
      %p197 = scmp.eq.s32.totalorder %s27, 2
      %p198 = por %p196, %p197
      %p199 = scmp.ne.s32.totalorder %s190, %s191
      %p200 = scmp.eq.s32.totalorder %s27, 0
      %p201 = por %p199, %p200
      %p202 = scmp.ne.s32.totalorder %s190, %s191
      %p203 = scmp.eq.s32.totalorder %s28, 2
      %p204 = por %p202, %p203
      %p206 = scmp.ne.s32.totalorder %s191, %s205
      %p207 = scmp.eq.s32.totalorder %s28, 0
      %p208 = por %p206, %p207
      %s210 = sadd.s32 %s209, 1
      %p213 = scmp.eq.s32.totalorder %s22, 2
      %p214 = scmp.ne.s32.totalorder %s209, %s211
      %p215 = scmp.eq.s32.totalorder %s22, 0
      %p216 = por %p214, %p215
      %p217 = scmp.ne.s32.totalorder %s209, %s211
      %p218 = scmp.eq.s32.totalorder %s27, 2
      %p219 = por %p217, %p218
      %p220 = scmp.ne.s32.totalorder %s211, %s212
      %p221 = scmp.eq.s32.totalorder %s27, 0
      %p222 = por %p220, %p221
      %p223 = scmp.ne.s32.totalorder %s211, %s212
      %p224 = scmp.eq.s32.totalorder %s28, 2
      %p225 = por %p223, %p224
      %p227 = scmp.ne.s32.totalorder %s212, %s226
      %p228 = scmp.eq.s32.totalorder %s28, 0
      %p229 = por %p227, %p228
      %p230 = scmp.le.s32.totalorder 1, %s22
      %p231 = scmp.lt.s32.totalorder %s22, 4
      %p232 = pnand %p230, %p231
      %p233 = pneg %p232
      // Predicated region
      $region9: #{graph_sage_forward.1} parent=5 // pred_check
        _
      $region10: #{graph_sage_forward.1} parent=5 // pred_check_branch
        %235 = sbr.rel (%p232) target = $region12
      $region11: #{graph_sage_forward.1} parent=5 // pred_region
        %s236 = ssub.s32 %s22, 1
        // Predicated region
        $region13: #{graph_sage_forward.1} parent=11 // pred_check
          %p237 = pneg %p60
        $region14: #{graph_sage_forward.1} parent=11 // pred_check_branch
          %239 = sbr.rel (%p237) target = $region16
        $region15: #{graph_sage_forward.1} parent=11 // pred_region
          %s240 = smul.u32 32, %s32
          %s242 = ssub.s32 4096, 4096
          %243 = vsyncadd [#allocation7], %s242
          %s244 = smul.addr %s240, 128
          %s245 = scalar_lea.hbm %s1, %s244
          %s246 = sshll.u32 [#allocation6], 4
          %s247 = int_to_ptr.vmem [resolvable:$true] %s246
          %252 = dma.hbm_to_vmem [thread:$0]  %s245, 4096, %s247, [#allocation7], 128, 128, 8
        $region16: #{graph_sage_forward.1} parent=11 // pred_fallthru
          _
        // Predicated region
        $region17: #{graph_sage_forward.1} parent=11 // pred_check
          %p253 = pneg %p138
        $region18: #{graph_sage_forward.1} parent=11 // pred_check_branch
          %255 = sbr.rel (%p253) target = $region20
        $region19: #{graph_sage_forward.1} parent=11 // pred_region
          %s256 = smul.u32 2, %s32
          %s258 = ssub.s32 128, 128
          %259 = vsyncadd [#allocation13], %s258
          %s260 = smul.addr %s256, 64
          %s261 = scalar_lea.hbm %s5, %s260
          %s263 = sshll.u32 [#allocation12], 4
          %s264 = int_to_ptr.vmem [resolvable:$true] %s263
          %266 = dma.hbm_to_vmem [thread:$0]  %s261, 128, %s264, [#allocation13]
        $region20: #{graph_sage_forward.1} parent=11 // pred_fallthru
          _
        // Predicated region
        $region21: #{graph_sage_forward.1} parent=11 // pred_check
          %p267 = pneg %p159
        $region22: #{graph_sage_forward.1} parent=11 // pred_check_branch
          %269 = sbr.rel (%p267) target = $region24
        $region23: #{graph_sage_forward.1} parent=11 // pred_region
          %s271 = ssub.s32 128, 128
          %272 = vsyncadd [#allocation13], %s271
          %s274 = sshll.u32 [#allocation14], 4
          %s275 = int_to_ptr.vmem [resolvable:$true] %s274
          %277 = dma.hbm_to_vmem [thread:$0]  %s6, 128, %s275, [#allocation13]
        $region24: #{graph_sage_forward.1} parent=11 // pred_fallthru
          _
        // Predicated region
        $region25: #{graph_sage_forward.1} parent=11 // pred_check
          %p278 = pneg %p180
        $region26: #{graph_sage_forward.1} parent=11 // pred_check_branch
          %280 = sbr.rel (%p278) target = $region28
        $region27: #{graph_sage_forward.1} parent=11 // pred_region
          %s282 = ssub.s32 1024, 1024
          %283 = vsyncadd [#allocation16], %s282
          %s284 = sshll.u32 [#allocation15], 4
          %s285 = int_to_ptr.vmem [resolvable:$true] %s284
          %290 = dma.hbm_to_vmem [thread:$0]  %s7, 1024, %s285, [#allocation16], 64, 64, 4
        $region28: #{graph_sage_forward.1} parent=11 // pred_fallthru
          _
        // Predicated region
        $region29: #{graph_sage_forward.1} parent=11 // pred_check
          %p291 = pneg %p201
        $region30: #{graph_sage_forward.1} parent=11 // pred_check_branch
          %293 = sbr.rel (%p291) target = $region32
        $region31: #{graph_sage_forward.1} parent=11 // pred_region
          %s295 = ssub.s32 16, 16
          %296 = vsyncadd [#allocation16], %s295
          %s298 = sshll.u32 [#allocation17], 4
          %s299 = int_to_ptr.vmem [resolvable:$true] %s298
          %301 = dma.hbm_to_vmem [thread:$0]  %s8, 16, %s299, [#allocation16]
        $region32: #{graph_sage_forward.1} parent=11 // pred_fallthru
          _
      $region12: #{graph_sage_forward.1} parent=5 // pred_fallthru
        _
      %p302 = scmp.lt.s32.totalorder %s22, 3
      // Predicated region
      $region33: #{graph_sage_forward.1} parent=5 // pred_check
        %p303 = pneg %p302
      $region34: #{graph_sage_forward.1} parent=5 // pred_check_branch
        %305 = sbr.rel (%p303) target = $region36
      $region35: #{graph_sage_forward.1} parent=5 // pred_region
        // Predicated region
        $region37: #{graph_sage_forward.1} parent=35 // pred_check
          %p306 = pneg %p80
        $region38: #{graph_sage_forward.1} parent=35 // pred_check_branch
          %308 = sbr.rel (%p306) target = $region40
        $region39: #{graph_sage_forward.1} parent=35 // pred_region
          %s309 = sand.u32 %s22, 1
          %s310 = scalar_lea.sflag [#allocation10], %s309
          %s311 = sand.u32 %s70, 1
          %s312 = smul.addr %s311, 128
          %s313 = scalar_lea.vmem [#allocation9], %s312
          %s315 = ssub.s32 2048, 2048
          %316 = vsyncadd %s310, %s315
          %s317 = smul.addr %s29, 32
          %s318 = smul.addr %s317, 64
          %s319 = scalar_lea.hbm %s3, %s318
          %s320 = sshll.u32 %s313, 4
          %s321 = int_to_ptr.vmem [resolvable:$true] %s320
          %326 = dma.hbm_to_vmem [thread:$0]  %s319, 2048, %s321, %s310, 64, 64, 4
        $region40: #{graph_sage_forward.1} parent=35 // pred_fallthru
          _
        // Predicated region
        $region41: #{graph_sage_forward.1} parent=35 // pred_check
          %p327 = pneg %p106
        $region42: #{graph_sage_forward.1} parent=35 // pred_check_branch
          %329 = sbr.rel (%p327) target = $region44
        $region43: #{graph_sage_forward.1} parent=35 // pred_region
          %s330 = sand.u32 %s22, 1
          %s331 = scalar_lea.sflag [#allocation10], %s330
          %s332 = sand.u32 %s96, 1
          %s333 = scalar_lea.vmem [#allocation11], %s332
          %s335 = ssub.s32 16, 16
          %336 = vsyncadd %s331, %s335
          %s337 = smul.addr %s29, 16
          %s338 = scalar_lea.hbm %s4, %s337
          %s340 = sshll.u32 %s333, 4
          %s341 = int_to_ptr.vmem [resolvable:$true] %s340
          %343 = dma.hbm_to_vmem [thread:$0]  %s338, 16, %s341, %s331
        $region44: #{graph_sage_forward.1} parent=35 // pred_fallthru
          _
      $region36: #{graph_sage_forward.1} parent=5 // pred_fallthru
        _
      %p344 = scmp.le.s32.totalorder 1, %s22
      %p345 = scmp.lt.s32.totalorder %s22, 4
      %p346 = pnand %p344, %p345
      %p347 = pneg %p346
      // Predicated region
      $region45: #{graph_sage_forward.1} parent=5 // pred_check
        _
      $region46: #{graph_sage_forward.1} parent=5 // pred_check_branch
        %349 = sbr.rel (%p346) target = $region48
      $region47: #{graph_sage_forward.1} parent=5 // pred_region
        %s350 = ssub.s32 %s22, 1
        // Predicated region
        $region49: #{graph_sage_forward.1} parent=47 // pred_check
          %p351 = pneg %p60
        $region50: #{graph_sage_forward.1} parent=47 // pred_check_branch
          %353 = sbr.rel (%p351) target = $region52
        $region51: #{graph_sage_forward.1} parent=47 // pred_region
          %354 = dma.done [#allocation7], 4096
        $region52: #{graph_sage_forward.1} parent=47 // pred_fallthru
          _
        %s355 = sand.u32 %s27, 1
        %s356 = scalar_lea.sflag [#allocation10], %s355
        %s357 = sand.u32 %s73, 1
        %s358 = smul.addr %s357, 128
        %s359 = scalar_lea.vmem [#allocation9], %s358
        // Predicated region
        $region53: #{graph_sage_forward.1} parent=47 // pred_check
          %p360 = pneg %p86
        $region54: #{graph_sage_forward.1} parent=47 // pred_check_branch
          %362 = sbr.rel (%p360) target = $region56
        $region55: #{graph_sage_forward.1} parent=47 // pred_region
          %363 = dma.done %s356, 2048
        $region56: #{graph_sage_forward.1} parent=47 // pred_fallthru
          _
        %s364 = sand.u32 %s27, 1
        %s365 = scalar_lea.sflag [#allocation10], %s364
        %s366 = sand.u32 %s99, 1
        %s367 = scalar_lea.vmem [#allocation11], %s366
        // Predicated region
        $region57: #{graph_sage_forward.1} parent=47 // pred_check
          %p368 = pneg %p112
        $region58: #{graph_sage_forward.1} parent=47 // pred_check_branch
          %370 = sbr.rel (%p368) target = $region60
        $region59: #{graph_sage_forward.1} parent=47 // pred_region
          %371 = dma.done %s365, 16
        $region60: #{graph_sage_forward.1} parent=47 // pred_fallthru
          _
        // Predicated region
        $region61: #{graph_sage_forward.1} parent=47 // pred_check
          %p372 = pneg %p138
        $region62: #{graph_sage_forward.1} parent=47 // pred_check_branch
          %374 = sbr.rel (%p372) target = $region64
        $region63: #{graph_sage_forward.1} parent=47 // pred_region
          %375 = dma.done [#allocation13], 128
        $region64: #{graph_sage_forward.1} parent=47 // pred_fallthru
          _
        // Predicated region
        $region65: #{graph_sage_forward.1} parent=47 // pred_check
          %p376 = pneg %p159
        $region66: #{graph_sage_forward.1} parent=47 // pred_check_branch
          %378 = sbr.rel (%p376) target = $region68
        $region67: #{graph_sage_forward.1} parent=47 // pred_region
          %379 = dma.done [#allocation13], 128
        $region68: #{graph_sage_forward.1} parent=47 // pred_fallthru
          _
        // Predicated region
        $region69: #{graph_sage_forward.1} parent=47 // pred_check
          %p380 = pneg %p180
        $region70: #{graph_sage_forward.1} parent=47 // pred_check_branch
          %382 = sbr.rel (%p380) target = $region72
        $region71: #{graph_sage_forward.1} parent=47 // pred_region
          %383 = dma.done [#allocation16], 1024
        $region72: #{graph_sage_forward.1} parent=47 // pred_fallthru
          _
        // Predicated region
        $region73: #{graph_sage_forward.1} parent=47 // pred_check
          %p384 = pneg %p201
        $region74: #{graph_sage_forward.1} parent=47 // pred_check_branch
          %386 = sbr.rel (%p384) target = $region76
        $region75: #{graph_sage_forward.1} parent=47 // pred_region
          %387 = dma.done [#allocation16], 16
        $region76: #{graph_sage_forward.1} parent=47 // pred_fallthru
          _
        %p388 = pneg %p60
        %p389 = pneg %p57
        %s390 = sand.u32 %s27, 1
        %s391 = scalar_lea.sflag [#allocation10], %s390
        %s392 = sand.u32 %s73, 1
        %s393 = smul.addr %s392, 128
        %s394 = scalar_lea.vmem [#allocation9], %s393
        %p395 = pneg %p86
        %p396 = pneg %p83
        %s397 = sand.u32 %s27, 1
        %s398 = scalar_lea.sflag [#allocation10], %s397
        %s399 = sand.u32 %s99, 1
        %s400 = scalar_lea.vmem [#allocation11], %s399
        %p401 = pneg %p112
        %p402 = pneg %p109
        %p403 = pneg %p138
        %p404 = pneg %p135
        %p405 = pneg %p159
        %p406 = pneg %p156
        %p407 = pneg %p180
        %p408 = pneg %p177
        %p409 = pneg %p201
        %p410 = pneg %p198
        %p411 = pneg %p222
        %p412 = pneg %p219
        %s413 = smul.u32 32, %s32
        %s414 = smul.u32 2, %s32
        %s416 = smul.u32 %s32, 256
        %p417 = scmp.eq.s32.totalorder %s31, 0
        %p418 = scmp.eq.s32.totalorder %s32, 0
        %p419 = pnand %p417, %p418
        %p420 = pneg %p419
        // Predicated region
        $region77: #{graph_sage_forward.1} parent=47 // pred_check
          _
        $region78: #{graph_sage_forward.1} parent=47 // pred_check_branch
          %422 = sbr.rel (%p419) target = $region80
        $region79: #{graph_sage_forward.1} parent=47 // pred_region
          $region81: #{graph_sage_forward.1} parent=79
            #allocation19 [shape = 's32[1]{0}', space=sflag, size = 0x4, scoped, tag = 'scoped memory for graph_sage_forward.1']
            %s423 = scalar_lea.vmem [#allocation2], 128
            // Predicated region
            $region82: #{graph_sage_forward.1} parent=81 // pred_check
              _
            $region83: #{graph_sage_forward.1} parent=81 // pred_check_branch
              %425 = sbr.rel target = $region85
            $region84: #{graph_sage_forward.1} parent=81 // pred_region
              %426 = sst [smem:[#allocation22]] [#allocation21]
              %427 = sst [smem:[#allocation23]] [#allocation20]
            $region85: #{graph_sage_forward.1} parent=81 // pred_fallthru
              _
            %429 = shalt.err (0)
            %s431 = sshll.u32 %s423, 4
            %s432 = int_to_ptr.vmem [resolvable:$true] %s431
            %434 = dma.hbm_to_vmem [thread:$0]  %s2, 2048, %s432, [#allocation19]
            %s435 = smul.u32 4, 32
            %s436 = smul.u32 %s435, 1
            %s437 = sshll.u32 %s436, 4
            %438 = dma.done [#allocation19], %s437
          $region86: #{graph_sage_forward.1} parent=79
            #allocation24 [shape = 's32[1]{0}', space=sflag, size = 0x4, scoped, tag = 'scoped memory for graph_sage_forward.1']
            #allocation26 [shape = 'u32[9]{0}', space=smem, size = 0x24, scoped, tag = 'DMA stride descriptor']
            %s440 = sshll.u32 1, 14
            %s441 = sxor.u32 4294967295, %s440
            %s443 = sld [smem:[#allocation0]]
            %s444 = sadd.s32 2, %s443
            %s446 = sshll.u32 7, 26
            %s447 = sxor.u32 4294967295, %s446
            %s448 = sand.u32 0, %s447
            %s449 = sshll.u32 %s444, 26
            %s450 = sor.u32 %s448, %s449
            %s451 = sshll.u32 [#allocation5], 4
            %s452 = int_to_ptr.vmem [resolvable:$true] %s451
            %455 = sst [smem:[#allocation26]] 256
            %s456 = scalar_lea.smem [#allocation26], 1
            %457 = sst [smem:[%s456]] 256
            %s458 = scalar_lea.smem [#allocation26], 2
            %459 = sst [smem:[%s458]] 2
            %s460 = scalar_lea.smem [#allocation26], 3
            %461 = sst [smem:[%s460]] 32
            %s462 = scalar_lea.smem [#allocation26], 4
            %463 = sst [smem:[%s462]] 128
            %s464 = scalar_lea.smem [#allocation26], 5
            %465 = sst [smem:[%s464]] 4
            %s466 = scalar_lea.smem [#allocation26], 6
            %467 = sst [smem:[%s466]] 64
            %s468 = scalar_lea.smem [#allocation26], 7
            %469 = sst [smem:[%s468]] 32
            %s470 = scalar_lea.smem [#allocation26], 8
            %471 = sst [smem:[%s470]] 2
            %473 = dma.general %s0, 2048, %s452, [#allocation24], [#allocation25], [#allocation26], %s450, 0
            %s474 = smul.u32 2, 32
            %s475 = smul.u32 %s474, 2
            %s476 = sshll.u32 %s475, 4
            %477 = dma.done [#allocation24], %s476
        $region80: #{graph_sage_forward.1} parent=47 // pred_fallthru
          _
        %p478 = scmp.eq.s32.totalorder %s31, 2
        %p479 = pnand %p478, %p418
        %p480 = pneg %p479
        // Predicated region
        $region87: #{graph_sage_forward.1} parent=47 // pred_check
          _
        $region88: #{graph_sage_forward.1} parent=47 // pred_check_branch
          %482 = sbr.rel (%p479) target = $region90
        $region89: #{graph_sage_forward.1} parent=47 // pred_region
          %483 = vst [vmem:[#allocation4] sm:$0xff] 0.0
        $region90: #{graph_sage_forward.1} parent=47 // pred_fallthru
          _
        %p484 = scmp.lt.s32.totalorder %s31, 0
        %s485 = ssub.s32 0, %s31
        %s486 = scalar_select %p484, %s485, %s31
        %s487 = sand.u32 %s486, 1
        %s488 = ssub.s32 0, %s487
        %s489 = scalar_select %p484, %s488, %s487
        %p490 = scmp.ne.s32.totalorder %s489, 0
        %p491 = scmp.lt.s32.totalorder %s489, 0
        %p492 = pnand %p491, %p490
        %p493 = pneg %p492
        %s494 = sadd.s32 %s489, 2
        %s495 = scalar_select %p493, %s494, %s489
        %s496 = ssub.s32 1, %s495
        %s497 = sshra.s32 %s416, 5
        %s498 = sand.u32 %s416, 31
        %s499 = smul.u32 %s497, 2
        %s500 = smul.addr %s499, 8
        %s501 = scalar_lea.vmem [#allocation5], %s500
        %v502 = vld [vmem:[%s501] sm:$0xff]
        %v503 = vld [vmem:[%s501 + $0x8] sm:$0xff]
        %v504 = vld [vmem:[%s501 + $0x10] sm:$0xff]
        %v505 = vld [vmem:[%s501 + $0x18] sm:$0xff]
        %v506 = vld [vmem:[%s501 + $0x20] sm:$0xff]
        %v507 = vld [vmem:[%s501 + $0x28] sm:$0xff]
        %v508 = vld [vmem:[%s501 + $0x30] sm:$0xff]
        %v509 = vld [vmem:[%s501 + $0x38] sm:$0xff]
        %v510 = vld [vmem:[%s501 + $0x40] sm:$0xff]
        %v511 = vld [vmem:[%s501 + $0x48] sm:$0xff]
        %v512 = vld [vmem:[%s501 + $0x50] sm:$0xff]
        %v513 = vld [vmem:[%s501 + $0x58] sm:$0xff]
        %v514 = vld [vmem:[%s501 + $0x60] sm:$0xff]
        %v515 = vld [vmem:[%s501 + $0x68] sm:$0xff]
        %v516 = vld [vmem:[%s501 + $0x70] sm:$0xff]
        %v517 = vld [vmem:[%s501 + $0x78] sm:$0xff]
        %s518 = smul.u32 %s496, 16
        %s519 = smul.addr %s518, 8
        %s520 = scalar_lea.vmem [#allocation2], %s519
        %v521 = vld [vmem:[%s520] sm:$0xff]
        %v522 = vld [vmem:[%s520 + $0x8] sm:$0xff]
        %v523 = vld [vmem:[%s520 + $0x10] sm:$0xff]
        %v524 = vld [vmem:[%s520 + $0x18] sm:$0xff]
        %v525 = vld [vmem:[%s520 + $0x20] sm:$0xff]
        %v526 = vld [vmem:[%s520 + $0x28] sm:$0xff]
        %v527 = vld [vmem:[%s520 + $0x30] sm:$0xff]
        %v528 = vld [vmem:[%s520 + $0x38] sm:$0xff]
        %v529 = vld [vmem:[%s520 + $0x40] sm:$0xff]
        %v530 = vld [vmem:[%s520 + $0x48] sm:$0xff]
        %v531 = vld [vmem:[%s520 + $0x50] sm:$0xff]
        %v532 = vld [vmem:[%s520 + $0x58] sm:$0xff]
        %v533 = vld [vmem:[%s520 + $0x60] sm:$0xff]
        %v534 = vld [vmem:[%s520 + $0x68] sm:$0xff]
        %v535 = vld [vmem:[%s520 + $0x70] sm:$0xff]
        %v536 = vld [vmem:[%s520 + $0x78] sm:$0xff]
        %s537 = sshra.s32 %s416, 4
        %s538 = sand.u32 %s416, 15
        %s539 = smul.addr %s537, 8
        %s540 = scalar_lea.vmem %s520, %s539 [#allocation2]
        %v541 = vld [vmem:[%s540] sm:$0xff]
        %v542 = vld [vmem:[%s540 + $0x8] sm:$0xff]
        %v543 = vld [vmem:[%s540 + $0x10] sm:$0xff]
        %v544 = vld [vmem:[%s540 + $0x18] sm:$0xff]
        %v545 = vld [vmem:[%s540 + $0x20] sm:$0xff]
        %v546 = vld [vmem:[%s540 + $0x28] sm:$0xff]
        %v547 = vld [vmem:[%s540 + $0x30] sm:$0xff]
        %v548 = vld [vmem:[%s540 + $0x38] sm:$0xff]
        %v549 = vld [vmem:[%s540 + $0x40] sm:$0xff]
        %v550 = vld [vmem:[%s540 + $0x48] sm:$0xff]
        %v551 = vld [vmem:[%s540 + $0x50] sm:$0xff]
        %v552 = vld [vmem:[%s540 + $0x58] sm:$0xff]
        %v553 = vld [vmem:[%s540 + $0x60] sm:$0xff]
        %v554 = vld [vmem:[%s540 + $0x68] sm:$0xff]
        %v555 = vld [vmem:[%s540 + $0x70] sm:$0xff]
        %v556 = vld [vmem:[%s540 + $0x78] sm:$0xff]
        %v557 = vunpack.c.l.s8.bf16 %v502
        %v558 = vunpack.c.l.s8.bf16 %v503
        %v559 = vunpack.c.h.s8.bf16 %v502
        %v560 = vunpack.c.h.s8.bf16 %v503
        %v561 = vunpack.c.l.s8.bf16 %v504
        %v562 = vunpack.c.l.s8.bf16 %v505
        %v563 = vunpack.c.h.s8.bf16 %v504
        %v564 = vunpack.c.h.s8.bf16 %v505
        %v565 = vunpack.c.l.s8.bf16 %v506
        %v566 = vunpack.c.l.s8.bf16 %v507
        %v567 = vunpack.c.h.s8.bf16 %v506
        %v568 = vunpack.c.h.s8.bf16 %v507
        %v569 = vunpack.c.l.s8.bf16 %v508
        %v570 = vunpack.c.l.s8.bf16 %v509
        %v571 = vunpack.c.h.s8.bf16 %v508
        %v572 = vunpack.c.h.s8.bf16 %v509
        %v573 = vunpack.c.l.s8.bf16 %v510
        %v574 = vunpack.c.l.s8.bf16 %v511
        %v575 = vunpack.c.h.s8.bf16 %v510
        %v576 = vunpack.c.h.s8.bf16 %v511
        %v577 = vunpack.c.l.s8.bf16 %v512
        %v578 = vunpack.c.l.s8.bf16 %v513
        %v579 = vunpack.c.h.s8.bf16 %v512
        %v580 = vunpack.c.h.s8.bf16 %v513
        %v581 = vunpack.c.l.s8.bf16 %v514
        %v582 = vunpack.c.l.s8.bf16 %v515
        %v583 = vunpack.c.h.s8.bf16 %v514
        %v584 = vunpack.c.h.s8.bf16 %v515
        %v585 = vunpack.c.l.s8.bf16 %v516
        %v586 = vunpack.c.l.s8.bf16 %v517
        %v587 = vunpack.c.h.s8.bf16 %v516
        %v588 = vunpack.c.h.s8.bf16 %v517
        %589 = vmatprep.subr.bf16.mxu0 0
        %590 = vmatpush1.bf16.msra.mxu0 %v521
        %591 = vmatprep.subr.bf16.mxu0 0
        %592 = vmatpush1.bf16.msra.mxu0 %v522
        %593 = vmatprep.subr.bf16.mxu0 0
        %594 = vmatpush1.bf16.msra.mxu0 %v523
        %595 = vmatprep.subr.bf16.mxu0 0
        %596 = vmatpush1.bf16.msra.mxu0 %v524
        %597 = vmatprep.subr.bf16.mxu0 0
        %598 = vmatpush1.bf16.msra.mxu0 %v525
        %599 = vmatprep.subr.bf16.mxu0 0
        %600 = vmatpush1.bf16.msra.mxu0 %v526
        %601 = vmatprep.subr.bf16.mxu0 0
        %602 = vmatpush1.bf16.msra.mxu0 %v527
        %603 = vmatprep.subr.bf16.mxu0 0
        %604 = vmatpush1.bf16.msra.mxu0 %v528
        %605 = vmatprep.subr.bf16.mxu0 0
        %606 = vmatpush1.bf16.msra.mxu0 %v529
        %607 = vmatprep.subr.bf16.mxu0 0
        %608 = vmatpush1.bf16.msra.mxu0 %v530
        %609 = vmatprep.subr.bf16.mxu0 0
        %610 = vmatpush1.bf16.msra.mxu0 %v531
        %611 = vmatprep.subr.bf16.mxu0 0
        %612 = vmatpush1.bf16.msra.mxu0 %v532
        %613 = vmatprep.subr.bf16.mxu0 0
        %614 = vmatpush1.bf16.msra.mxu0 %v533
        %615 = vmatprep.subr.bf16.mxu0 0
        %616 = vmatpush1.bf16.msra.mxu0 %v534
        %617 = vmatprep.subr.bf16.mxu0 0
        %618 = vmatpush1.bf16.msra.mxu0 %v535
        %619 = vmatprep.subr.bf16.mxu0 0
        %620 = vmatpush1.bf16.msra.mxu0 %v536
        %621 = vmatprep.mubr.bf16.mxu0 %v558
        %622 = vmatmul.mubr.bf16.gmra.mrb[0].mxu0 %v557
        %v623 = vpop.f32.mrb[0].mxu0
        %v624 = vadd.f32 0.0, %v623
        %v625 = vpop.f32.mrb[0].mxu0
        %v626 = vpop.f32.mrb[0].mxu0
        %v627 = vadd.f32 0.0, %v626
        %v628 = vpop.f32.mrb[0].mxu0
        %629 = vmatprep.mubr.bf16.mxu0 %v560
        %630 = vmatmul.mubr.bf16.gmra.mrb[0].mxu0 %v559
        %v631 = vpop.f32.mrb[0].mxu0
        %v632 = vadd.f32 0.0, %v631
        %v633 = vpop.f32.mrb[0].mxu0
        %v634 = vpop.f32.mrb[0].mxu0
        %v635 = vadd.f32 0.0, %v634
        %v636 = vpop.f32.mrb[0].mxu0
        %637 = vmatprep.mubr.bf16.mxu0 %v562
        %638 = vmatmul.mubr.bf16.gmra.mrb[0].mxu0 %v561
        %v639 = vpop.f32.mrb[0].mxu0
        %v640 = vadd.f32 0.0, %v639
        %v641 = vpop.f32.mrb[0].mxu0
        %v642 = vpop.f32.mrb[0].mxu0
        %v643 = vadd.f32 0.0, %v642
        %v644 = vpop.f32.mrb[0].mxu0
        %645 = vmatprep.mubr.bf16.mxu0 %v564
        %646 = vmatmul.mubr.bf16.gmra.mrb[0].mxu0 %v563
        %v647 = vpop.f32.mrb[0].mxu0
        %v648 = vadd.f32 0.0, %v647
        %v649 = vpop.f32.mrb[0].mxu0
        %v650 = vpop.f32.mrb[0].mxu0
        %v651 = vadd.f32 0.0, %v650
        %v652 = vpop.f32.mrb[0].mxu0
        %653 = vmatprep.mubr.bf16.mxu0 %v566
        %654 = vmatmul.mubr.bf16.gmra.mrb[0].mxu0 %v565
        %v655 = vpop.f32.mrb[0].mxu0
        %v656 = vadd.f32 0.0, %v655
        %v657 = vpop.f32.mrb[0].mxu0
        %v658 = vpop.f32.mrb[0].mxu0
        %v659 = vadd.f32 0.0, %v658
        %v660 = vpop.f32.mrb[0].mxu0
        %661 = vmatprep.mubr.bf16.mxu0 %v568
        %662 = vmatmul.mubr.bf16.gmra.mrb[0].mxu0 %v567
        %v663 = vpop.f32.mrb[0].mxu0
        %v664 = vadd.f32 0.0, %v663
        %v665 = vpop.f32.mrb[0].mxu0
        %v666 = vpop.f32.mrb[0].mxu0
        %v667 = vadd.f32 0.0, %v666
        %v668 = vpop.f32.mrb[0].mxu0
        %669 = vmatprep.mubr.bf16.mxu0 %v570
        %670 = vmatmul.mubr.bf16.gmra.mrb[0].mxu0 %v569
        %v671 = vpop.f32.mrb[0].mxu0
        %v672 = vadd.f32 0.0, %v671
        %v673 = vpop.f32.mrb[0].mxu0
        %v674 = vpop.f32.mrb[0].mxu0
        %v675 = vadd.f32 0.0, %v674
        %v676 = vpop.f32.mrb[0].mxu0
        %677 = vmatprep.mubr.bf16.mxu0 %v572
        %678 = vmatmul.mubr.bf16.gmra.mrb[0].mxu0 %v571
        %v679 = vpop.f32.mrb[0].mxu0
        %v680 = vadd.f32 0.0, %v679
        %v681 = vpop.f32.mrb[0].mxu0
        %v682 = vpop.f32.mrb[0].mxu0
        %v683 = vadd.f32 0.0, %v682
        %v684 = vpop.f32.mrb[0].mxu0
        %685 = vmatprep.mubr.bf16.mxu0 %v574
        %686 = vmatmul.mubr.bf16.gmra.mrb[0].mxu0 %v573
        %v687 = vpop.f32.mrb[0].mxu0
        %v688 = vadd.f32 0.0, %v687
        %v689 = vpop.f32.mrb[0].mxu0
        %v690 = vpop.f32.mrb[0].mxu0
        %v691 = vadd.f32 0.0, %v690
        %v692 = vpop.f32.mrb[0].mxu0
        %693 = vmatprep.mubr.bf16.mxu0 %v576
        %694 = vmatmul.mubr.bf16.gmra.mrb[0].mxu0 %v575
        %v695 = vpop.f32.mrb[0].mxu0
        %v696 = vadd.f32 0.0, %v695
        %v697 = vpop.f32.mrb[0].mxu0
        %v698 = vpop.f32.mrb[0].mxu0
        %v699 = vadd.f32 0.0, %v698
        %v700 = vpop.f32.mrb[0].mxu0
        %701 = vmatprep.mubr.bf16.mxu0 %v578
        %702 = vmatmul.mubr.bf16.gmra.mrb[0].mxu0 %v577
        %v703 = vpop.f32.mrb[0].mxu0
        %v704 = vadd.f32 0.0, %v703
        %v705 = vpop.f32.mrb[0].mxu0
        %v706 = vpop.f32.mrb[0].mxu0
        %v707 = vadd.f32 0.0, %v706
        %v708 = vpop.f32.mrb[0].mxu0
        %709 = vmatprep.mubr.bf16.mxu0 %v580
        %710 = vmatmul.mubr.bf16.gmra.mrb[0].mxu0 %v579
        %v711 = vpop.f32.mrb[0].mxu0
        %v712 = vadd.f32 0.0, %v711
        %v713 = vpop.f32.mrb[0].mxu0
        %v714 = vpop.f32.mrb[0].mxu0
        %v715 = vadd.f32 0.0, %v714
        %v716 = vpop.f32.mrb[0].mxu0
        %717 = vmatprep.mubr.bf16.mxu0 %v582
        %718 = vmatmul.mubr.bf16.gmra.mrb[0].mxu0 %v581
        %v719 = vpop.f32.mrb[0].mxu0
        %v720 = vadd.f32 0.0, %v719
        %v721 = vpop.f32.mrb[0].mxu0
        %v722 = vpop.f32.mrb[0].mxu0
        %v723 = vadd.f32 0.0, %v722
        %v724 = vpop.f32.mrb[0].mxu0
        %725 = vmatprep.mubr.bf16.mxu0 %v584
        %726 = vmatmul.mubr.bf16.gmra.mrb[0].mxu0 %v583
        %v727 = vpop.f32.mrb[0].mxu0
        %v728 = vadd.f32 0.0, %v727
        %v729 = vpop.f32.mrb[0].mxu0
        %v730 = vpop.f32.mrb[0].mxu0
        %v731 = vadd.f32 0.0, %v730
        %v732 = vpop.f32.mrb[0].mxu0
        %733 = vmatprep.mubr.bf16.mxu0 %v586
        %734 = vmatmul.mubr.bf16.gmra.mrb[0].mxu0 %v585
        %v735 = vpop.f32.mrb[0].mxu0
        %v736 = vadd.f32 0.0, %v735
        %v737 = vpop.f32.mrb[0].mxu0
        %v738 = vpop.f32.mrb[0].mxu0
        %v739 = vadd.f32 0.0, %v738
        %v740 = vpop.f32.mrb[0].mxu0
        %741 = vmatprep.mubr.bf16.mxu0 %v588
        %742 = vmatmul.mubr.bf16.gmra.mrb[0].mxu0 %v587
        %v743 = vpop.f32.mrb[0].mxu0
        %v744 = vadd.f32 0.0, %v743
        %v745 = vpop.f32.mrb[0].mxu0
        %v746 = vpop.f32.mrb[0].mxu0
        %v747 = vadd.f32 0.0, %v746
        %v748 = vpop.f32.mrb[0].mxu0
        %749 = vdwg.mxu0
        %v750 = vld [vmem:[#allocation6] sm:$0xff]
        %v751 = vld [vmem:[#allocation6 + $0x8] sm:$0xff]
        %v752 = vld [vmem:[#allocation6 + $0x10] sm:$0xff]
        %v753 = vld [vmem:[#allocation6 + $0x18] sm:$0xff]
        %v754 = vld [vmem:[#allocation6 + $0x20] sm:$0xff]
        %v755 = vld [vmem:[#allocation6 + $0x28] sm:$0xff]
        %v756 = vld [vmem:[#allocation6 + $0x30] sm:$0xff]
        %v757 = vld [vmem:[#allocation6 + $0x38] sm:$0xff]
        %v758 = vld [vmem:[#allocation6 + $0x40] sm:$0xff]
        %v759 = vld [vmem:[#allocation6 + $0x48] sm:$0xff]
        %v760 = vld [vmem:[#allocation6 + $0x50] sm:$0xff]
        %v761 = vld [vmem:[#allocation6 + $0x58] sm:$0xff]
        %v762 = vld [vmem:[#allocation6 + $0x60] sm:$0xff]
        %v763 = vld [vmem:[#allocation6 + $0x68] sm:$0xff]
        %v764 = vld [vmem:[#allocation6 + $0x70] sm:$0xff]
        %v765 = vld [vmem:[#allocation6 + $0x78] sm:$0xff]
        %v766 = vld [vmem:[#allocation6 + $0x80] sm:$0xff]
        %v767 = vld [vmem:[#allocation6 + $0x88] sm:$0xff]
        %v768 = vld [vmem:[#allocation6 + $0x90] sm:$0xff]
        %v769 = vld [vmem:[#allocation6 + $0x98] sm:$0xff]
        %v770 = vld [vmem:[#allocation6 + $0xa0] sm:$0xff]
        %v771 = vld [vmem:[#allocation6 + $0xa8] sm:$0xff]
        %v772 = vld [vmem:[#allocation6 + $0xb0] sm:$0xff]
        %v773 = vld [vmem:[#allocation6 + $0xb8] sm:$0xff]
        %v774 = vld [vmem:[#allocation6 + $0xc0] sm:$0xff]
        %v775 = vld [vmem:[#allocation6 + $0xc8] sm:$0xff]
        %v776 = vld [vmem:[#allocation6 + $0xd0] sm:$0xff]
        %v777 = vld [vmem:[#allocation6 + $0xd8] sm:$0xff]
        %v778 = vld [vmem:[#allocation6 + $0xe0] sm:$0xff]
        %v779 = vld [vmem:[#allocation6 + $0xe8] sm:$0xff]
        %v780 = vld [vmem:[#allocation6 + $0xf0] sm:$0xff]
        %v781 = vld [vmem:[#allocation6 + $0xf8] sm:$0xff]
        %783 = vset.pattern.permute.xlu0 0
        %784 = vperm.xlu0 %783, %v750
        %v785 = vpop.permute.xlu0 %784
        %788 = vset.pattern.permute.xlu0 0
        %789 = vperm.xlu0 %788, %v751
        %v790 = vpop.permute.xlu0 %789
        %793 = vset.pattern.permute.xlu0 0
        %794 = vperm.xlu0 %793, %v752
        %v795 = vpop.permute.xlu0 %794
        %798 = vset.pattern.permute.xlu0 0
        %799 = vperm.xlu0 %798, %v753
        %v800 = vpop.permute.xlu0 %799
        %803 = vset.pattern.permute.xlu0 0
        %804 = vperm.xlu0 %803, %v754
        %v805 = vpop.permute.xlu0 %804
        %808 = vset.pattern.permute.xlu0 0
        %809 = vperm.xlu0 %808, %v755
        %v810 = vpop.permute.xlu0 %809
        %813 = vset.pattern.permute.xlu0 0
        %814 = vperm.xlu0 %813, %v756
        %v815 = vpop.permute.xlu0 %814
        %818 = vset.pattern.permute.xlu0 0
        %819 = vperm.xlu0 %818, %v757
        %v820 = vpop.permute.xlu0 %819
        %823 = vset.pattern.permute.xlu0 0
        %824 = vperm.xlu0 %823, %v758
        %v825 = vpop.permute.xlu0 %824
        %828 = vset.pattern.permute.xlu0 0
        %829 = vperm.xlu0 %828, %v759
        %v830 = vpop.permute.xlu0 %829
        %833 = vset.pattern.permute.xlu0 0
        %834 = vperm.xlu0 %833, %v760
        %v835 = vpop.permute.xlu0 %834
        %838 = vset.pattern.permute.xlu0 0
        %839 = vperm.xlu0 %838, %v761
        %v840 = vpop.permute.xlu0 %839
        %843 = vset.pattern.permute.xlu0 0
        %844 = vperm.xlu0 %843, %v762
        %v845 = vpop.permute.xlu0 %844
        %848 = vset.pattern.permute.xlu0 0
        %849 = vperm.xlu0 %848, %v763
        %v850 = vpop.permute.xlu0 %849
        %853 = vset.pattern.permute.xlu0 0
        %854 = vperm.xlu0 %853, %v764
        %v855 = vpop.permute.xlu0 %854
        %858 = vset.pattern.permute.xlu0 0
        %859 = vperm.xlu0 %858, %v765
        %v860 = vpop.permute.xlu0 %859
        %863 = vset.pattern.permute.xlu0 0
        %864 = vperm.xlu0 %863, %v766
        %v865 = vpop.permute.xlu0 %864
        %868 = vset.pattern.permute.xlu0 0
        %869 = vperm.xlu0 %868, %v767
        %v870 = vpop.permute.xlu0 %869
        %873 = vset.pattern.permute.xlu0 0
        %874 = vperm.xlu0 %873, %v768
        %v875 = vpop.permute.xlu0 %874
        %878 = vset.pattern.permute.xlu0 0
        %879 = vperm.xlu0 %878, %v769
        %v880 = vpop.permute.xlu0 %879
        %883 = vset.pattern.permute.xlu0 0
        %884 = vperm.xlu0 %883, %v770
        %v885 = vpop.permute.xlu0 %884
        %888 = vset.pattern.permute.xlu0 0
        %889 = vperm.xlu0 %888, %v771
        %v890 = vpop.permute.xlu0 %889
        %893 = vset.pattern.permute.xlu0 0
        %894 = vperm.xlu0 %893, %v772
        %v895 = vpop.permute.xlu0 %894
        %898 = vset.pattern.permute.xlu0 0
        %899 = vperm.xlu0 %898, %v773
        %v900 = vpop.permute.xlu0 %899
        %903 = vset.pattern.permute.xlu0 0
        %904 = vperm.xlu0 %903, %v774
        %v905 = vpop.permute.xlu0 %904
        %908 = vset.pattern.permute.xlu0 0
        %909 = vperm.xlu0 %908, %v775
        %v910 = vpop.permute.xlu0 %909
        %913 = vset.pattern.permute.xlu0 0
        %914 = vperm.xlu0 %913, %v776
        %v915 = vpop.permute.xlu0 %914
        %918 = vset.pattern.permute.xlu0 0
        %919 = vperm.xlu0 %918, %v777
        %v920 = vpop.permute.xlu0 %919
        %923 = vset.pattern.permute.xlu0 0
        %924 = vperm.xlu0 %923, %v778
        %v925 = vpop.permute.xlu0 %924
        %928 = vset.pattern.permute.xlu0 0
        %929 = vperm.xlu0 %928, %v779
        %v930 = vpop.permute.xlu0 %929
        %933 = vset.pattern.permute.xlu0 0
        %934 = vperm.xlu0 %933, %v780
        %v935 = vpop.permute.xlu0 %934
        %938 = vset.pattern.permute.xlu0 0
        %939 = vperm.xlu0 %938, %v781
        %v940 = vpop.permute.xlu0 %939
        %v942 = vmul.f32 %v624, %v785
        %v943 = vmul.f32 %v627, %v790
        %v944 = vmul.f32 %v632, %v795
        %v945 = vmul.f32 %v635, %v800
        %v946 = vmul.f32 %v640, %v805
        %v947 = vmul.f32 %v643, %v810
        %v948 = vmul.f32 %v648, %v815
        %v949 = vmul.f32 %v651, %v820
        %v950 = vmul.f32 %v656, %v825
        %v951 = vmul.f32 %v659, %v830
        %v952 = vmul.f32 %v664, %v835
        %v953 = vmul.f32 %v667, %v840
        %v954 = vmul.f32 %v672, %v845
        %v955 = vmul.f32 %v675, %v850
        %v956 = vmul.f32 %v680, %v855
        %v957 = vmul.f32 %v683, %v860
        %v958 = vmul.f32 %v688, %v865
        %v959 = vmul.f32 %v691, %v870
        %v960 = vmul.f32 %v696, %v875
        %v961 = vmul.f32 %v699, %v880
        %v962 = vmul.f32 %v704, %v885
        %v963 = vmul.f32 %v707, %v890
        %v964 = vmul.f32 %v712, %v895
        %v965 = vmul.f32 %v715, %v900
        %v966 = vmul.f32 %v720, %v905
        %v967 = vmul.f32 %v723, %v910
        %v968 = vmul.f32 %v728, %v915
        %v969 = vmul.f32 %v731, %v920
        %v970 = vmul.f32 %v736, %v925
        %v971 = vmul.f32 %v739, %v930
        %v972 = vmul.f32 %v744, %v935
        %v973 = vmul.f32 %v747, %v940
        %v974 = vpack.c.bf16 %v943, %v942
        %v975 = vpack.c.bf16 %v945, %v944
        %v976 = vpack.c.bf16 %v947, %v946
        %v977 = vpack.c.bf16 %v949, %v948
        %v978 = vpack.c.bf16 %v951, %v950
        %v979 = vpack.c.bf16 %v953, %v952
        %v980 = vpack.c.bf16 %v955, %v954
        %v981 = vpack.c.bf16 %v957, %v956
        %v982 = vpack.c.bf16 %v959, %v958
        %v983 = vpack.c.bf16 %v961, %v960
        %v984 = vpack.c.bf16 %v963, %v962
        %v985 = vpack.c.bf16 %v965, %v964
        %v986 = vpack.c.bf16 %v967, %v966
        %v987 = vpack.c.bf16 %v969, %v968
        %v988 = vpack.c.bf16 %v971, %v970
        %v989 = vpack.c.bf16 %v973, %v972
        %990 = vst [vmem:[#allocation3] sm:$0xff] %v974
        %991 = vst [vmem:[#allocation3 + $0x10] sm:$0xff] %v975
        %992 = vst [vmem:[#allocation3 + $0x20] sm:$0xff] %v976
        %993 = vst [vmem:[#allocation3 + $0x30] sm:$0xff] %v977
        %994 = vst [vmem:[#allocation3 + $0x40] sm:$0xff] %v978
        %995 = vst [vmem:[#allocation3 + $0x50] sm:$0xff] %v979
        %996 = vst [vmem:[#allocation3 + $0x60] sm:$0xff] %v980
        %997 = vst [vmem:[#allocation3 + $0x70] sm:$0xff] %v981
        %998 = vst [vmem:[#allocation3 + $0x80] sm:$0xff] %v982
        %999 = vst [vmem:[#allocation3 + $0x90] sm:$0xff] %v983
        %1000 = vst [vmem:[#allocation3 + $0xa0] sm:$0xff] %v984
        %1001 = vst [vmem:[#allocation3 + $0xb0] sm:$0xff] %v985
        %1002 = vst [vmem:[#allocation3 + $0xc0] sm:$0xff] %v986
        %1003 = vst [vmem:[#allocation3 + $0xd0] sm:$0xff] %v987
        %1004 = vst [vmem:[#allocation3 + $0xe0] sm:$0xff] %v988
        %1005 = vst [vmem:[#allocation3 + $0xf0] sm:$0xff] %v989
        %1006 = vst [vmem:[#allocation3 + $0x8] sm:$0xff] %v541
        %1007 = vst [vmem:[#allocation3 + $0x18] sm:$0xff] %v542
        %1008 = vst [vmem:[#allocation3 + $0x28] sm:$0xff] %v543
        %1009 = vst [vmem:[#allocation3 + $0x38] sm:$0xff] %v544
        %1010 = vst [vmem:[#allocation3 + $0x48] sm:$0xff] %v545
        %1011 = vst [vmem:[#allocation3 + $0x58] sm:$0xff] %v546
        %1012 = vst [vmem:[#allocation3 + $0x68] sm:$0xff] %v547
        %1013 = vst [vmem:[#allocation3 + $0x78] sm:$0xff] %v548
        %1014 = vst [vmem:[#allocation3 + $0x88] sm:$0xff] %v549
        %1015 = vst [vmem:[#allocation3 + $0x98] sm:$0xff] %v550
        %1016 = vst [vmem:[#allocation3 + $0xa8] sm:$0xff] %v551
        %1017 = vst [vmem:[#allocation3 + $0xb8] sm:$0xff] %v552
        %1018 = vst [vmem:[#allocation3 + $0xc8] sm:$0xff] %v553
        %1019 = vst [vmem:[#allocation3 + $0xd8] sm:$0xff] %v554
        %1020 = vst [vmem:[#allocation3 + $0xe8] sm:$0xff] %v555
        %1021 = vst [vmem:[#allocation3 + $0xf8] sm:$0xff] %v556
        %v1022 = vld [vmem:[#allocation3] sm:$0xff]
        %v1023 = vld [vmem:[#allocation3 + $0x8] sm:$0xff]
        %v1024 = vld [vmem:[#allocation3 + $0x10] sm:$0xff]
        %v1025 = vld [vmem:[#allocation3 + $0x18] sm:$0xff]
        %v1026 = vld [vmem:[#allocation3 + $0x20] sm:$0xff]
        %v1027 = vld [vmem:[#allocation3 + $0x28] sm:$0xff]
        %v1028 = vld [vmem:[#allocation3 + $0x30] sm:$0xff]
        %v1029 = vld [vmem:[#allocation3 + $0x38] sm:$0xff]
        %v1030 = vld [vmem:[#allocation3 + $0x40] sm:$0xff]
        %v1031 = vld [vmem:[#allocation3 + $0x48] sm:$0xff]
        %v1032 = vld [vmem:[#allocation3 + $0x50] sm:$0xff]
        %v1033 = vld [vmem:[#allocation3 + $0x58] sm:$0xff]
        %v1034 = vld [vmem:[#allocation3 + $0x60] sm:$0xff]
        %v1035 = vld [vmem:[#allocation3 + $0x68] sm:$0xff]
        %v1036 = vld [vmem:[#allocation3 + $0x70] sm:$0xff]
        %v1037 = vld [vmem:[#allocation3 + $0x78] sm:$0xff]
        %v1038 = vld [vmem:[#allocation3 + $0x80] sm:$0xff]
        %v1039 = vld [vmem:[#allocation3 + $0x88] sm:$0xff]
        %v1040 = vld [vmem:[#allocation3 + $0x90] sm:$0xff]
        %v1041 = vld [vmem:[#allocation3 + $0x98] sm:$0xff]
        %v1042 = vld [vmem:[#allocation3 + $0xa0] sm:$0xff]
        %v1043 = vld [vmem:[#allocation3 + $0xa8] sm:$0xff]
        %v1044 = vld [vmem:[#allocation3 + $0xb0] sm:$0xff]
        %v1045 = vld [vmem:[#allocation3 + $0xb8] sm:$0xff]
        %v1046 = vld [vmem:[#allocation3 + $0xc0] sm:$0xff]
        %v1047 = vld [vmem:[#allocation3 + $0xc8] sm:$0xff]
        %v1048 = vld [vmem:[#allocation3 + $0xd0] sm:$0xff]
        %v1049 = vld [vmem:[#allocation3 + $0xd8] sm:$0xff]
        %v1050 = vld [vmem:[#allocation3 + $0xe0] sm:$0xff]
        %v1051 = vld [vmem:[#allocation3 + $0xe8] sm:$0xff]
        %v1052 = vld [vmem:[#allocation3 + $0xf0] sm:$0xff]
        %v1053 = vld [vmem:[#allocation3 + $0xf8] sm:$0xff]
        %v1054 = vld [vmem:[%s359] sm:$0xf]
        %v1055 = vld [vmem:[%s359 + $0x4] sm:$0xf]
        %v1056 = vld [vmem:[%s359 + $0x8] sm:$0xf]
        %v1057 = vld [vmem:[%s359 + $0xc] sm:$0xf]
        %v1058 = vld [vmem:[%s359 + $0x10] sm:$0xf]
        %v1059 = vld [vmem:[%s359 + $0x14] sm:$0xf]
        %v1060 = vld [vmem:[%s359 + $0x18] sm:$0xf]
        %v1061 = vld [vmem:[%s359 + $0x1c] sm:$0xf]
        %v1062 = vld [vmem:[%s359 + $0x20] sm:$0xf]
        %v1063 = vld [vmem:[%s359 + $0x24] sm:$0xf]
        %v1064 = vld [vmem:[%s359 + $0x28] sm:$0xf]
        %v1065 = vld [vmem:[%s359 + $0x2c] sm:$0xf]
        %v1066 = vld [vmem:[%s359 + $0x30] sm:$0xf]
        %v1067 = vld [vmem:[%s359 + $0x34] sm:$0xf]
        %v1068 = vld [vmem:[%s359 + $0x38] sm:$0xf]
        %v1069 = vld [vmem:[%s359 + $0x3c] sm:$0xf]
        %v1070 = vld [vmem:[%s359 + $0x40] sm:$0xf]
        %v1071 = vld [vmem:[%s359 + $0x44] sm:$0xf]
        %v1072 = vld [vmem:[%s359 + $0x48] sm:$0xf]
        %v1073 = vld [vmem:[%s359 + $0x4c] sm:$0xf]
        %v1074 = vld [vmem:[%s359 + $0x50] sm:$0xf]
        %v1075 = vld [vmem:[%s359 + $0x54] sm:$0xf]
        %v1076 = vld [vmem:[%s359 + $0x58] sm:$0xf]
        %v1077 = vld [vmem:[%s359 + $0x5c] sm:$0xf]
        %v1078 = vld [vmem:[%s359 + $0x60] sm:$0xf]
        %v1079 = vld [vmem:[%s359 + $0x64] sm:$0xf]
        %v1080 = vld [vmem:[%s359 + $0x68] sm:$0xf]
        %v1081 = vld [vmem:[%s359 + $0x6c] sm:$0xf]
        %v1082 = vld [vmem:[%s359 + $0x70] sm:$0xf]
        %v1083 = vld [vmem:[%s359 + $0x74] sm:$0xf]
        %v1084 = vld [vmem:[%s359 + $0x78] sm:$0xf]
        %v1085 = vld [vmem:[%s359 + $0x7c] sm:$0xf]
        %v1086 = vld [vmem:[%s367] sm:$0x1]
        %v1088 = vlaneseq
        %v1089 = vshrl.u32 %v1088, 7
        %v1090 = vsub.s32 0, %v1089
        %v1091 = vrot.slane %v1086, %v1090
        %v1125 = vunpack.c.l.b16 %v1054
        %v1126 = vunpack.c.l.b16 %v1055
        %v1127 = vunpack.c.l.b16 %v1056
        %v1128 = vunpack.c.l.b16 %v1057
        %v1129 = vunpack.c.l.b16 %v1058
        %v1130 = vunpack.c.l.b16 %v1059
        %v1131 = vunpack.c.l.b16 %v1060
        %v1132 = vunpack.c.l.b16 %v1061
        %v1133 = vunpack.c.l.b16 %v1062
        %v1134 = vunpack.c.l.b16 %v1063
        %v1135 = vunpack.c.l.b16 %v1064
        %v1136 = vunpack.c.l.b16 %v1065
        %v1137 = vunpack.c.l.b16 %v1066
        %v1138 = vunpack.c.l.b16 %v1067
        %v1139 = vunpack.c.l.b16 %v1068
        %v1140 = vunpack.c.l.b16 %v1069
        %v1141 = vunpack.c.l.b16 %v1070
        %v1142 = vunpack.c.l.b16 %v1071
        %v1143 = vunpack.c.l.b16 %v1072
        %v1144 = vunpack.c.l.b16 %v1073
        %v1145 = vunpack.c.l.b16 %v1074
        %v1146 = vunpack.c.l.b16 %v1075
        %v1147 = vunpack.c.l.b16 %v1076
        %v1148 = vunpack.c.l.b16 %v1077
        %v1149 = vunpack.c.l.b16 %v1078
        %v1150 = vunpack.c.l.b16 %v1079
        %v1151 = vunpack.c.l.b16 %v1080
        %v1152 = vunpack.c.l.b16 %v1081
        %v1153 = vunpack.c.l.b16 %v1082
        %v1154 = vunpack.c.l.b16 %v1083
        %v1155 = vunpack.c.l.b16 %v1084
        %v1156 = vunpack.c.l.b16 %v1085
        %v1157 = vpack.c.b16 %v1126, %v1125
        %v1158 = vpack.c.b16 %v1128, %v1127
        %v1159 = vpack.c.b16 %v1130, %v1129
        %v1160 = vpack.c.b16 %v1132, %v1131
        %v1161 = vpack.c.b16 %v1134, %v1133
        %v1162 = vpack.c.b16 %v1136, %v1135
        %v1163 = vpack.c.b16 %v1138, %v1137
        %v1164 = vpack.c.b16 %v1140, %v1139
        %v1165 = vpack.c.b16 %v1142, %v1141
        %v1166 = vpack.c.b16 %v1144, %v1143
        %v1167 = vpack.c.b16 %v1146, %v1145
        %v1168 = vpack.c.b16 %v1148, %v1147
        %v1169 = vpack.c.b16 %v1150, %v1149
        %v1170 = vpack.c.b16 %v1152, %v1151
        %v1171 = vpack.c.b16 %v1154, %v1153
        %v1172 = vpack.c.b16 %v1156, %v1155
        %1189 = vmatprep.subr.bf16.mxu0 0
        %1190 = vmatpush1.bf16.msra.mxu0 %v1157
        %1191 = vmatprep.subr.bf16.mxu0 0
        %1192 = vmatpush1.bf16.msra.mxu0 %v1158
        %1193 = vmatprep.subr.bf16.mxu0 0
        %1194 = vmatpush1.bf16.msra.mxu0 %v1159
        %1195 = vmatprep.subr.bf16.mxu0 0
        %1196 = vmatpush1.bf16.msra.mxu0 %v1160
        %1197 = vmatprep.subr.bf16.mxu0 0
        %1198 = vmatpush1.bf16.msra.mxu0 %v1161
        %1199 = vmatprep.subr.bf16.mxu0 0
        %1200 = vmatpush1.bf16.msra.mxu0 %v1162
        %1201 = vmatprep.subr.bf16.mxu0 0
        %1202 = vmatpush1.bf16.msra.mxu0 %v1163
        %1203 = vmatprep.subr.bf16.mxu0 0
        %1204 = vmatpush1.bf16.msra.mxu0 %v1164
        %1205 = vmatprep.subr.bf16.mxu0 0
        %1206 = vmatpush1.bf16.msra.mxu0 %v1165
        %1207 = vmatprep.subr.bf16.mxu0 0
        %1208 = vmatpush1.bf16.msra.mxu0 %v1166
        %1209 = vmatprep.subr.bf16.mxu0 0
        %1210 = vmatpush1.bf16.msra.mxu0 %v1167
        %1211 = vmatprep.subr.bf16.mxu0 0
        %1212 = vmatpush1.bf16.msra.mxu0 %v1168
        %1213 = vmatprep.subr.bf16.mxu0 0
        %1214 = vmatpush1.bf16.msra.mxu0 %v1169
        %1215 = vmatprep.subr.bf16.mxu0 0
        %1216 = vmatpush1.bf16.msra.mxu0 %v1170
        %1217 = vmatprep.subr.bf16.mxu0 0
        %1218 = vmatpush1.bf16.msra.mxu0 %v1171
        %1219 = vmatprep.subr.bf16.mxu0 0
        %1220 = vmatpush1.bf16.msra.mxu0 %v1172
        %1221 = vmatprep.mubr.bf16.mxu0 %v1023
        %1222 = vmatmul.mubr.bf16.gmra.mrb[0].mxu0 %v1022
        %v1223 = vpop.f32.mrb[0].mxu0
        %v1224 = vadd.f32 %v1091, %v1223
        %v1225 = vpop.f32.mrb[0].mxu0
        %v1226 = vpop.f32.mrb[0].mxu0
        %v1227 = vadd.f32 %v1091, %v1226
        %v1228 = vpop.f32.mrb[0].mxu0
        %1229 = vmatprep.mubr.bf16.mxu0 %v1025
        %1230 = vmatmul.mubr.bf16.gmra.mrb[0].mxu0 %v1024
        %v1231 = vpop.f32.mrb[0].mxu0
        %v1232 = vadd.f32 %v1091, %v1231
        %v1233 = vpop.f32.mrb[0].mxu0
        %v1234 = vpop.f32.mrb[0].mxu0
        %v1235 = vadd.f32 %v1091, %v1234
        %v1236 = vpop.f32.mrb[0].mxu0
        %1237 = vmatprep.mubr.bf16.mxu0 %v1027
        %1238 = vmatmul.mubr.bf16.gmra.mrb[0].mxu0 %v1026
        %v1239 = vpop.f32.mrb[0].mxu0
        %v1240 = vadd.f32 %v1091, %v1239
        %v1241 = vpop.f32.mrb[0].mxu0
        %v1242 = vpop.f32.mrb[0].mxu0
        %v1243 = vadd.f32 %v1091, %v1242
        %v1244 = vpop.f32.mrb[0].mxu0
        %1245 = vmatprep.mubr.bf16.mxu0 %v1029
        %1246 = vmatmul.mubr.bf16.gmra.mrb[0].mxu0 %v1028
        %v1247 = vpop.f32.mrb[0].mxu0
        %v1248 = vadd.f32 %v1091, %v1247
        %v1249 = vpop.f32.mrb[0].mxu0
        %v1250 = vpop.f32.mrb[0].mxu0
        %v1251 = vadd.f32 %v1091, %v1250
        %v1252 = vpop.f32.mrb[0].mxu0
        %1253 = vmatprep.mubr.bf16.mxu0 %v1031
        %1254 = vmatmul.mubr.bf16.gmra.mrb[0].mxu0 %v1030
        %v1255 = vpop.f32.mrb[0].mxu0
        %v1256 = vadd.f32 %v1091, %v1255
        %v1257 = vpop.f32.mrb[0].mxu0
        %v1258 = vpop.f32.mrb[0].mxu0
        %v1259 = vadd.f32 %v1091, %v1258
        %v1260 = vpop.f32.mrb[0].mxu0
        %1261 = vmatprep.mubr.bf16.mxu0 %v1033
        %1262 = vmatmul.mubr.bf16.gmra.mrb[0].mxu0 %v1032
        %v1263 = vpop.f32.mrb[0].mxu0
        %v1264 = vadd.f32 %v1091, %v1263
        %v1265 = vpop.f32.mrb[0].mxu0
        %v1266 = vpop.f32.mrb[0].mxu0
        %v1267 = vadd.f32 %v1091, %v1266
        %v1268 = vpop.f32.mrb[0].mxu0
        %1269 = vmatprep.mubr.bf16.mxu0 %v1035
        %1270 = vmatmul.mubr.bf16.gmra.mrb[0].mxu0 %v1034
        %v1271 = vpop.f32.mrb[0].mxu0
        %v1272 = vadd.f32 %v1091, %v1271
        %v1273 = vpop.f32.mrb[0].mxu0
        %v1274 = vpop.f32.mrb[0].mxu0
        %v1275 = vadd.f32 %v1091, %v1274
        %v1276 = vpop.f32.mrb[0].mxu0
        %1277 = vmatprep.mubr.bf16.mxu0 %v1037
        %1278 = vmatmul.mubr.bf16.gmra.mrb[0].mxu0 %v1036
        %v1279 = vpop.f32.mrb[0].mxu0
        %v1280 = vadd.f32 %v1091, %v1279
        %v1281 = vpop.f32.mrb[0].mxu0
        %v1282 = vpop.f32.mrb[0].mxu0
        %v1283 = vadd.f32 %v1091, %v1282
        %v1284 = vpop.f32.mrb[0].mxu0
        %1285 = vmatprep.mubr.bf16.mxu0 %v1039
        %1286 = vmatmul.mubr.bf16.gmra.mrb[0].mxu0 %v1038
        %v1287 = vpop.f32.mrb[0].mxu0
        %v1288 = vadd.f32 %v1091, %v1287
        %v1289 = vpop.f32.mrb[0].mxu0
        %v1290 = vpop.f32.mrb[0].mxu0
        %v1291 = vadd.f32 %v1091, %v1290
        %v1292 = vpop.f32.mrb[0].mxu0
        %1293 = vmatprep.mubr.bf16.mxu0 %v1041
        %1294 = vmatmul.mubr.bf16.gmra.mrb[0].mxu0 %v1040
        %v1295 = vpop.f32.mrb[0].mxu0
        %v1296 = vadd.f32 %v1091, %v1295
        %v1297 = vpop.f32.mrb[0].mxu0
        %v1298 = vpop.f32.mrb[0].mxu0
        %v1299 = vadd.f32 %v1091, %v1298
        %v1300 = vpop.f32.mrb[0].mxu0
        %1301 = vmatprep.mubr.bf16.mxu0 %v1043
        %1302 = vmatmul.mubr.bf16.gmra.mrb[0].mxu0 %v1042
        %v1303 = vpop.f32.mrb[0].mxu0
        %v1304 = vadd.f32 %v1091, %v1303
        %v1305 = vpop.f32.mrb[0].mxu0
        %v1306 = vpop.f32.mrb[0].mxu0
        %v1307 = vadd.f32 %v1091, %v1306
        %v1308 = vpop.f32.mrb[0].mxu0
        %1309 = vmatprep.mubr.bf16.mxu0 %v1045
        %1310 = vmatmul.mubr.bf16.gmra.mrb[0].mxu0 %v1044
        %v1311 = vpop.f32.mrb[0].mxu0
        %v1312 = vadd.f32 %v1091, %v1311
        %v1313 = vpop.f32.mrb[0].mxu0
        %v1314 = vpop.f32.mrb[0].mxu0
        %v1315 = vadd.f32 %v1091, %v1314
        %v1316 = vpop.f32.mrb[0].mxu0
        %1317 = vmatprep.mubr.bf16.mxu0 %v1047
        %1318 = vmatmul.mubr.bf16.gmra.mrb[0].mxu0 %v1046
        %v1319 = vpop.f32.mrb[0].mxu0
        %v1320 = vadd.f32 %v1091, %v1319
        %v1321 = vpop.f32.mrb[0].mxu0
        %v1322 = vpop.f32.mrb[0].mxu0
        %v1323 = vadd.f32 %v1091, %v1322
        %v1324 = vpop.f32.mrb[0].mxu0
        %1325 = vmatprep.mubr.bf16.mxu0 %v1049
        %1326 = vmatmul.mubr.bf16.gmra.mrb[0].mxu0 %v1048
        %v1327 = vpop.f32.mrb[0].mxu0
        %v1328 = vadd.f32 %v1091, %v1327
        %v1329 = vpop.f32.mrb[0].mxu0
        %v1330 = vpop.f32.mrb[0].mxu0
        %v1331 = vadd.f32 %v1091, %v1330
        %v1332 = vpop.f32.mrb[0].mxu0
        %1333 = vmatprep.mubr.bf16.mxu0 %v1051
        %1334 = vmatmul.mubr.bf16.gmra.mrb[0].mxu0 %v1050
        %v1335 = vpop.f32.mrb[0].mxu0
        %v1336 = vadd.f32 %v1091, %v1335
        %v1337 = vpop.f32.mrb[0].mxu0
        %v1338 = vpop.f32.mrb[0].mxu0
        %v1339 = vadd.f32 %v1091, %v1338
        %v1340 = vpop.f32.mrb[0].mxu0
        %1341 = vmatprep.mubr.bf16.mxu0 %v1053
        %1342 = vmatmul.mubr.bf16.gmra.mrb[0].mxu0 %v1052
        %v1343 = vpop.f32.mrb[0].mxu0
        %v1344 = vadd.f32 %v1091, %v1343
        %v1345 = vpop.f32.mrb[0].mxu0
        %v1346 = vpop.f32.mrb[0].mxu0
        %v1347 = vadd.f32 %v1091, %v1346
        %v1348 = vpop.f32.mrb[0].mxu0
        %1349 = vdwg.mxu0
        %v1350 = vmax.f32 %v1224, 0.0
        %v1351 = vmax.f32 %v1227, 0.0
        %v1352 = vmax.f32 %v1232, 0.0
        %v1353 = vmax.f32 %v1235, 0.0
        %v1354 = vmax.f32 %v1240, 0.0
        %v1355 = vmax.f32 %v1243, 0.0
        %v1356 = vmax.f32 %v1248, 0.0
        %v1357 = vmax.f32 %v1251, 0.0
        %v1358 = vmax.f32 %v1256, 0.0
        %v1359 = vmax.f32 %v1259, 0.0
        %v1360 = vmax.f32 %v1264, 0.0
        %v1361 = vmax.f32 %v1267, 0.0
        %v1362 = vmax.f32 %v1272, 0.0
        %v1363 = vmax.f32 %v1275, 0.0
        %v1364 = vmax.f32 %v1280, 0.0
        %v1365 = vmax.f32 %v1283, 0.0
        %v1366 = vmax.f32 %v1288, 0.0
        %v1367 = vmax.f32 %v1291, 0.0
        %v1368 = vmax.f32 %v1296, 0.0
        %v1369 = vmax.f32 %v1299, 0.0
        %v1370 = vmax.f32 %v1304, 0.0
        %v1371 = vmax.f32 %v1307, 0.0
        %v1372 = vmax.f32 %v1312, 0.0
        %v1373 = vmax.f32 %v1315, 0.0
        %v1374 = vmax.f32 %v1320, 0.0
        %v1375 = vmax.f32 %v1323, 0.0
        %v1376 = vmax.f32 %v1328, 0.0
        %v1377 = vmax.f32 %v1331, 0.0
        %v1378 = vmax.f32 %v1336, 0.0
        %v1379 = vmax.f32 %v1339, 0.0
        %v1380 = vmax.f32 %v1344, 0.0
        %v1381 = vmax.f32 %v1347, 0.0
        %v1382 = vpack.c.bf16 %v1351, %v1350
        %v1383 = vpack.c.bf16 %v1353, %v1352
        %v1384 = vpack.c.bf16 %v1355, %v1354
        %v1385 = vpack.c.bf16 %v1357, %v1356
        %v1386 = vpack.c.bf16 %v1359, %v1358
        %v1387 = vpack.c.bf16 %v1361, %v1360
        %v1388 = vpack.c.bf16 %v1363, %v1362
        %v1389 = vpack.c.bf16 %v1365, %v1364
        %v1390 = vpack.c.bf16 %v1367, %v1366
        %v1391 = vpack.c.bf16 %v1369, %v1368
        %v1392 = vpack.c.bf16 %v1371, %v1370
        %v1393 = vpack.c.bf16 %v1373, %v1372
        %v1394 = vpack.c.bf16 %v1375, %v1374
        %v1395 = vpack.c.bf16 %v1377, %v1376
        %v1396 = vpack.c.bf16 %v1379, %v1378
        %v1397 = vpack.c.bf16 %v1381, %v1380
        %s1398 = smul.u32 %s495, 16
        %s1399 = smul.addr %s1398, 8
        %s1400 = scalar_lea.vmem [#allocation2], %s1399
        %s1401 = smul.addr %s537, 8
        %s1402 = scalar_lea.vmem %s1400, %s1401 [#allocation2]
        %1403 = vst [vmem:[%s1402] sm:$0xff] %v1382
        %1404 = vst [vmem:[%s1402 + $0x8] sm:$0xff] %v1383
        %1405 = vst [vmem:[%s1402 + $0x10] sm:$0xff] %v1384
        %1406 = vst [vmem:[%s1402 + $0x18] sm:$0xff] %v1385
        %1407 = vst [vmem:[%s1402 + $0x20] sm:$0xff] %v1386
        %1408 = vst [vmem:[%s1402 + $0x28] sm:$0xff] %v1387
        %1409 = vst [vmem:[%s1402 + $0x30] sm:$0xff] %v1388
        %1410 = vst [vmem:[%s1402 + $0x38] sm:$0xff] %v1389
        %1411 = vst [vmem:[%s1402 + $0x40] sm:$0xff] %v1390
        %1412 = vst [vmem:[%s1402 + $0x48] sm:$0xff] %v1391
        %1413 = vst [vmem:[%s1402 + $0x50] sm:$0xff] %v1392
        %1414 = vst [vmem:[%s1402 + $0x58] sm:$0xff] %v1393
        %1415 = vst [vmem:[%s1402 + $0x60] sm:$0xff] %v1394
        %1416 = vst [vmem:[%s1402 + $0x68] sm:$0xff] %v1395
        %1417 = vst [vmem:[%s1402 + $0x70] sm:$0xff] %v1396
        %1418 = vst [vmem:[%s1402 + $0x78] sm:$0xff] %v1397
        // Predicated region
        $region91: #{graph_sage_forward.1} parent=47 // pred_check
          %p1419 = pneg %p478
        $region92: #{graph_sage_forward.1} parent=47 // pred_check_branch
          %1421 = sbr.rel (%p1419) target = $region94
        $region93: #{graph_sage_forward.1} parent=47 // pred_region
          %v1422 = vld [vmem:[#allocation4] sm:$0xff]
          %v1423 = vld [vmem:[#allocation12] sm:$0xff]
          %v1425 = vunpack.c.l.b16 %v1423
          %v1426 = vunpack.c.h.b16 %v1423
          %v1427 = vpack.c.b16 %v1425, %v1425
          %v1428 = vpack.c.b16 %v1426, %v1426
          %1431 = vmatprep.subr.bf16.mxu0 0
          %1432 = vmatpush1.bf16.msra.mxu0 %v1382
          %1433 = vmatprep.subr.bf16.mxu0 0
          %1434 = vmatpush1.bf16.msra.mxu0 %v1383
          %1435 = vmatprep.subr.bf16.mxu0 0
          %1436 = vmatpush1.bf16.msra.mxu0 %v1384
          %1437 = vmatprep.subr.bf16.mxu0 0
          %1438 = vmatpush1.bf16.msra.mxu0 %v1385
          %1439 = vmatprep.subr.bf16.mxu0 0
          %1440 = vmatpush1.bf16.msra.mxu0 %v1386
          %1441 = vmatprep.subr.bf16.mxu0 0
          %1442 = vmatpush1.bf16.msra.mxu0 %v1387
          %1443 = vmatprep.subr.bf16.mxu0 0
          %1444 = vmatpush1.bf16.msra.mxu0 %v1388
          %1445 = vmatprep.subr.bf16.mxu0 0
          %1446 = vmatpush1.bf16.msra.mxu0 %v1389
          %1447 = vmatprep.subr.bf16.mxu0 0
          %1448 = vmatpush1.bf16.msra.mxu0 %v1390
          %1449 = vmatprep.subr.bf16.mxu0 0
          %1450 = vmatpush1.bf16.msra.mxu0 %v1391
          %1451 = vmatprep.subr.bf16.mxu0 0
          %1452 = vmatpush1.bf16.msra.mxu0 %v1392
          %1453 = vmatprep.subr.bf16.mxu0 0
          %1454 = vmatpush1.bf16.msra.mxu0 %v1393
          %1455 = vmatprep.subr.bf16.mxu0 0
          %1456 = vmatpush1.bf16.msra.mxu0 %v1394
          %1457 = vmatprep.subr.bf16.mxu0 0
          %1458 = vmatpush1.bf16.msra.mxu0 %v1395
          %1459 = vmatprep.subr.bf16.mxu0 0
          %1460 = vmatpush1.bf16.msra.mxu0 %v1396
          %1461 = vmatprep.subr.bf16.mxu0 0
          %1462 = vmatpush1.bf16.msra.mxu0 %v1397
          %1463 = vmatprep.mubr.bf16.mxu0 %v1428
          %1464 = vmatmul.mubr.bf16.gmra.mrb[0].mxu0 %v1427
          %v1465 = vpop.f32.mrb[0].mxu0
          %v1466 = vadd.f32 0.0, %v1465
          %v1467 = vpop.f32.mrb[0].mxu0
          %v1468 = vpop.f32.mrb[0].mxu0
          %v1469 = vpop.f32.mrb[0].mxu0
          %1470 = vdwg.mxu0
          %v1471 = vadd.f32 %v1422, %v1466
          %1472 = vst [vmem:[#allocation4] sm:$0xff] %v1471
        $region94: #{graph_sage_forward.1} parent=47 // pred_fallthru
          _
        // Predicated region
        $region95: #{graph_sage_forward.1} parent=47 // pred_check
          _
        $region96: #{graph_sage_forward.1} parent=47 // pred_check_branch
          %1474 = sbr.rel (%p479) target = $region98
        $region97: #{graph_sage_forward.1} parent=47 // pred_region
          %v1475 = vld [vmem:[#allocation4] sm:$0xff]
          %v1476 = vld [vmem:[#allocation14] sm:$0xff]
          %1478 = vset.pattern.permute.xlu0 0
          %1479 = vperm.xlu0 %1478, %v1476
          %v1480 = vpop.permute.xlu0 %1479
          %v1482 = vmul.f32 %v1475, %v1480
          %v1483 = vpack.c.bf16 %v1482, %v1482
          %v1484 = vld [vmem:[#allocation15] sm:$0xf]
          %v1485 = vld [vmem:[#allocation15 + $0x4] sm:$0xf]
          %v1486 = vld [vmem:[#allocation15 + $0x8] sm:$0xf]
          %v1487 = vld [vmem:[#allocation15 + $0xc] sm:$0xf]
          %v1488 = vld [vmem:[#allocation15 + $0x10] sm:$0xf]
          %v1489 = vld [vmem:[#allocation15 + $0x14] sm:$0xf]
          %v1490 = vld [vmem:[#allocation15 + $0x18] sm:$0xf]
          %v1491 = vld [vmem:[#allocation15 + $0x1c] sm:$0xf]
          %v1492 = vld [vmem:[#allocation15 + $0x20] sm:$0xf]
          %v1493 = vld [vmem:[#allocation15 + $0x24] sm:$0xf]
          %v1494 = vld [vmem:[#allocation15 + $0x28] sm:$0xf]
          %v1495 = vld [vmem:[#allocation15 + $0x2c] sm:$0xf]
          %v1496 = vld [vmem:[#allocation15 + $0x30] sm:$0xf]
          %v1497 = vld [vmem:[#allocation15 + $0x34] sm:$0xf]
          %v1498 = vld [vmem:[#allocation15 + $0x38] sm:$0xf]
          %v1499 = vld [vmem:[#allocation15 + $0x3c] sm:$0xf]
          %v1500 = vld [vmem:[#allocation17] sm:$0x1]
          %v1502 = vlaneseq
          %v1503 = vshrl.u32 %v1502, 7
          %v1504 = vsub.s32 0, %v1503
          %v1505 = vrot.slane %v1500, %v1504
          %v1523 = vunpack.c.l.b16 %v1484
          %v1524 = vunpack.c.l.b16 %v1485
          %v1525 = vunpack.c.l.b16 %v1486
          %v1526 = vunpack.c.l.b16 %v1487
          %v1527 = vunpack.c.l.b16 %v1488
          %v1528 = vunpack.c.l.b16 %v1489
          %v1529 = vunpack.c.l.b16 %v1490
          %v1530 = vunpack.c.l.b16 %v1491
          %v1531 = vunpack.c.l.b16 %v1492
          %v1532 = vunpack.c.l.b16 %v1493
          %v1533 = vunpack.c.l.b16 %v1494
          %v1534 = vunpack.c.l.b16 %v1495
          %v1535 = vunpack.c.l.b16 %v1496
          %v1536 = vunpack.c.l.b16 %v1497
          %v1537 = vunpack.c.l.b16 %v1498
          %v1538 = vunpack.c.l.b16 %v1499
          %v1539 = vpack.c.b16 %v1524, %v1523
          %v1540 = vpack.c.b16 %v1526, %v1525
          %v1541 = vpack.c.b16 %v1528, %v1527
          %v1542 = vpack.c.b16 %v1530, %v1529
          %v1543 = vpack.c.b16 %v1532, %v1531
          %v1544 = vpack.c.b16 %v1534, %v1533
          %v1545 = vpack.c.b16 %v1536, %v1535
          %v1546 = vpack.c.b16 %v1538, %v1537
          %1555 = vmatprep.subr.bf16.mxu0 0
          %1556 = vmatpush1.bf16.msra.mxu0 %v1539
          %1557 = vmatprep.subr.bf16.mxu0 0
          %1558 = vmatpush1.bf16.msra.mxu0 %v1540
          %1559 = vmatprep.subr.bf16.mxu0 0
          %1560 = vmatpush1.bf16.msra.mxu0 %v1541
          %1561 = vmatprep.subr.bf16.mxu0 0
          %1562 = vmatpush1.bf16.msra.mxu0 %v1542
          %1563 = vmatprep.subr.bf16.mxu0 0
          %1564 = vmatpush1.bf16.msra.mxu0 %v1543
          %1565 = vmatprep.subr.bf16.mxu0 0
          %1566 = vmatpush1.bf16.msra.mxu0 %v1544
          %1567 = vmatprep.subr.bf16.mxu0 0
          %1568 = vmatpush1.bf16.msra.mxu0 %v1545
          %1569 = vmatprep.subr.bf16.mxu0 0
          %1570 = vmatpush1.bf16.msra.mxu0 %v1546
          %1571 = vmatprep.subr.bf16.mxu0 0
          %1572 = vmatpush1.bf16.msra.mxu0 0
          %1573 = vmatprep.subr.bf16.mxu0 0
          %1574 = vmatpush1.bf16.msra.mxu0 0
          %1575 = vmatprep.subr.bf16.mxu0 0
          %1576 = vmatpush1.bf16.msra.mxu0 0
          %1577 = vmatprep.subr.bf16.mxu0 0
          %1578 = vmatpush1.bf16.msra.mxu0 0
          %1579 = vmatprep.subr.bf16.mxu0 0
          %1580 = vmatpush1.bf16.msra.mxu0 0
          %1581 = vmatprep.subr.bf16.mxu0 0
          %1582 = vmatpush1.bf16.msra.mxu0 0
          %1583 = vmatprep.subr.bf16.mxu0 0
          %1584 = vmatpush1.bf16.msra.mxu0 0
          %1585 = vmatprep.subr.bf16.mxu0 0
          %1586 = vmatpush1.bf16.msra.mxu0 0
          %1587 = vmatprep.mubr.bf16.mxu0 0
          %1588 = vmatmul.mubr.bf16.gmra.mrb[0].mxu0 %v1483
          %v1589 = vpop.f32.mrb[0].mxu0
          %v1590 = vadd.f32 %v1505, %v1589
          %v1591 = vpop.f32.mrb[0].mxu0
          %v1592 = vpop.f32.mrb[0].mxu0
          %v1593 = vpop.f32.mrb[0].mxu0
          %1594 = vdwg.mxu0
          %1595 = vst [vmem:[#allocation18] sm:$0xff] %v1590
        $region98: #{graph_sage_forward.1} parent=47 // pred_fallthru
          _
        // Predicated region
        $region99: #{graph_sage_forward.1} parent=47 // pred_check
          %p1596 = pneg %p219
        $region100: #{graph_sage_forward.1} parent=47 // pred_check_branch
          %1598 = sbr.rel (%p1596) target = $region102
        $region101: #{graph_sage_forward.1} parent=47 // pred_region
          %s1600 = ssub.s32 128, 128
          %1601 = vsyncadd [#allocation8], %s1600
          %s1603 = sshll.u32 [#allocation18], 4
          %s1604 = int_to_ptr.vmem [resolvable:$true] %s1603
          %1606 = dma.vmem_to_hbm [thread:$0]  %s1604, 128, %s9, [#allocation8]
        $region102: #{graph_sage_forward.1} parent=47 // pred_fallthru
          _
        // Predicated region
        $region103: #{graph_sage_forward.1} parent=47 // pred_check
          %p1607 = pneg %p219
        $region104: #{graph_sage_forward.1} parent=47 // pred_check_branch
          %1609 = sbr.rel (%p1607) target = $region106
        $region105: #{graph_sage_forward.1} parent=47 // pred_region
          %1610 = dma.done [#allocation8], 128
        $region106: #{graph_sage_forward.1} parent=47 // pred_fallthru
          _
      $region48: #{graph_sage_forward.1} parent=5 // pred_fallthru
        _
      %p1611 = scmp.le.s32.totalorder 2, %s22
      // Predicated region
      $region107: #{graph_sage_forward.1} parent=5 // pred_check
        %p1612 = pneg %p1611
      $region108: #{graph_sage_forward.1} parent=5 // pred_check_branch
        %1614 = sbr.rel (%p1612) target = $region110
      $region109: #{graph_sage_forward.1} parent=5 // pred_region
        %s1615 = ssub.s32 %s22, 2
      $region110: #{graph_sage_forward.1} parent=5 // pred_fallthru
        _
    $region6: #{graph_sage_forward.1} parent=1 // loop_footer
      %s26 = sadd.s32 1, %s22
    $region7: #{graph_sage_forward.1} parent=1 // loop_footer_branch
      %21 = sbr.rel target = $region3
    $region8: #{graph_sage_forward.1} parent=1 // loop_exit
      _
    %1616 = vsyncpa [#allocation7], 1
    %s1617 = scalar_lea.sflag [#allocation7], 1
    %1618 = vsyncpa %s1617, 1
    %1619 = vsyncpa [#allocation10], 1
    %s1620 = scalar_lea.sflag [#allocation10], 1
    %1621 = vsyncpa %s1620, 1
    %1622 = vsyncpa [#allocation13], 1
    %1623 = vsyncpa [#allocation16], 1
    %1624 = vsyncpa [#allocation8], 1
    %s1625 = scalar_lea.sflag [#allocation8], 1
    %1626 = vsyncpa %s1625, 1

</llo_original>
